<compile_context>
chip_gen: v7x
topology: tpu7x:2x2x1
jax: 0.10.0
libtpu: 0.0.40
codegen_flags: <defaults>
</compile_context>

<pallas_src>
import jax
import jax.numpy as jnp
import numpy as np
from jax.experimental import pallas as pl
from jax.experimental.pallas import tpu as pltpu

B = 2                        # batch
H = W = 28                   # input spatial (28 -> conv 24 -> pool 12 -> 144 = fc1 in)
K = 5                        # conv kernel size
CO = H - K + 1               # 24  (conv output side)
PO = CO // 2                 # 12  (pool output side)
NCLS = 10                    # fc1 out-features
CONVW = H * W - (W * (K - 1) + (K - 1))   # 668: flat width holding all valid conv cols
POOLW = CONVW - W - 1                     # 639: flat width holding all pooled cols

HIGHEST = jax.lax.Precision.HIGHEST


def small_model_kernel(x_ref, wconv_ref, bconv_ref, wfc_ref, bfc_ref, out_ref):
    # x_ref     : (B, 784)     f32 VMEM  -- per-image row-major flattened input
    # wconv_ref : (5, 5)       f32 SMEM  -- conv taps (scalar reads)
    # bconv_ref : (1,)         f32 SMEM  -- conv bias (scalar)
    # wfc_ref   : (639, 10)    f32 VMEM  -- fc weight with pool-column selection folded in
    # bfc_ref   : (1, 10)      f32 VMEM
    # out_ref   : (B, 10)      f32 VMEM

    x = x_ref[...]                                            # (B, 784)

    # 5x5 valid conv as 25 statically shifted VPU multiply-adds (exact f32).
    # acc[:, c] = sum_{p,q} x[:, c + 28p + q] * w[p, q]; for c = 28*i + j (i,j < 24)
    # this is the valid conv output at spatial (i, j).  Other columns are junk and
    # are never selected downstream.
    acc = x[:, 0:CONVW] * wconv_ref[0, 0]
    for p in range(K):
        for q in range(K):
            if p == 0 and q == 0:
                continue
            s = W * p + q
            acc = acc + x[:, s:s + CONVW] * wconv_ref[p, q]
    conv = jnp.maximum(acc + bconv_ref[0], 0.0)               # (B, 668)

    # 2x2 / stride-2 max pool: pooled (i2, j2) = max of flat cols
    # {c, c+1, c+28, c+29}, c = 56*i2 + 2*j2 <= 638.  One 4-way max over shifted
    # views; dead columns hit zero rows of wfc_ref below.
    m = jnp.maximum(
        jnp.maximum(conv[:, 0:POOLW], conv[:, 1:POOLW + 1]),
        jnp.maximum(conv[:, W:W + POOLW], conv[:, W + 1:W + 1 + POOLW]),
    )                                                         # (B, 639)

    # flatten + Linear(144, 10) as ONE small matmul: the column selection and
    # PyTorch's row-major flatten are encoded in wfc_ref (zeros elsewhere).
    out_ref[...] = (jnp.dot(m, wfc_ref[...],
                            preferred_element_type=jnp.float32,
                            precision=HIGHEST)
                    + bfc_ref[...])


def _fc_with_pool_selection(wfc):
    """(639, 10) weight: row 56*i2 + 2*j2 holds fc1.weight[:, 12*i2 + j2]."""
    i2, j2 = np.meshgrid(np.arange(PO), np.arange(PO), indexing="ij")
    rows = (2 * W * i2 + 2 * j2).reshape(-1)                  # order == 12*i2 + j2
    return jnp.zeros((POOLW, NCLS), jnp.float32).at[rows].set(wfc.T)


@jax.jit
def small_model(x_nchw, wconv, bconv, wfc, bfc):
    # Layout plumbing only — all FLOPs run inside the kernel.
    x_flat = x_nchw.reshape(B, H * W)                         # squeeze C, flatten HW
    w_fc_sel = _fc_with_pool_selection(wfc)                   # (639, 10), ~25 KB
    bfc_r = bfc.reshape(1, NCLS)
    return pl.pallas_call(
        small_model_kernel,
        out_shape=jax.ShapeDtypeStruct((B, NCLS), jnp.float32),
        in_specs=[
            pl.BlockSpec(memory_space=pltpu.MemorySpace.VMEM),   # x_flat
            pl.BlockSpec(memory_space=pltpu.MemorySpace.SMEM),   # conv weight (5,5) scalars
            pl.BlockSpec(memory_space=pltpu.MemorySpace.SMEM),   # conv bias scalar
            pl.BlockSpec(memory_space=pltpu.MemorySpace.VMEM),   # fc weight (+selection)
            pl.BlockSpec(memory_space=pltpu.MemorySpace.VMEM),   # fc bias
        ],
        out_specs=pl.BlockSpec(memory_space=pltpu.MemorySpace.VMEM),
    )(x_flat, wconv, bconv, w_fc_sel, bfc_r)


def reference(x_nchw, wconv, bconv, wfc, bfc):
    # Pure-JAX reference matching PyTorch semantics.
    conv = jax.lax.conv_general_dilated(
        x_nchw, wconv.reshape(1, 1, K, K), window_strides=(1, 1),
        padding="VALID", dimension_numbers=("NCHW", "OIHW", "NCHW"),
        precision=HIGHEST)
    conv = jnp.maximum(conv + bconv.reshape(1, 1, 1, 1), 0.0)
    pooled = jax.lax.reduce_window(conv, -jnp.inf, jax.lax.max,
                                   (1, 1, 2, 2), (1, 1, 2, 2), "VALID")
    flat = pooled.reshape(B, -1)                              # (B, 144)
    return jnp.dot(flat, wfc.T, precision=HIGHEST) + bfc


if __name__ == "__main__":
    key = jax.random.PRNGKey(0)
    kx, kw1, kb1, kw2, kb2 = jax.random.split(key, 5)

    # Deterministic synthetic parameters (shapes implied by the module's __init__).
    x = jax.random.normal(kx, (B, 1, H, W), dtype=jnp.float32)
    wconv = jax.random.normal(kw1, (K, K), dtype=jnp.float32) * 0.2          # Conv2d(1,1,5).weight
    bconv = jax.random.normal(kb1, (1,), dtype=jnp.float32) * 0.1            # Conv2d(1,1,5).bias
    wfc = jax.random.normal(kw2, (NCLS, PO * PO), dtype=jnp.float32) * 0.05  # Linear(144,10).weight
    bfc = jax.random.normal(kb2, (NCLS,), dtype=jnp.float32) * 0.1           # Linear(144,10).bias

    out = small_model(x, wconv, bconv, wfc, bfc)
    jax.block_until_ready(out)

    ref = reference(x, wconv, bconv, wfc, bfc)
    np.testing.assert_allclose(np.asarray(out), np.asarray(ref), rtol=1e-4, atol=1e-4)

    print("KERNEL_OK")
</pallas_src>

<mosaic_0001>
module attributes {stable_mosaic.version = 11 : i64} {
  func.func @small_model_kernel(%arg0: memref<2x784xf32, #tpu.memory_space<vmem>>, %arg1: memref<5x5xf32, #tpu.memory_space<smem>>, %arg2: memref<1xf32, #tpu.memory_space<smem>>, %arg3: memref<639x10xf32, #tpu.memory_space<vmem>>, %arg4: memref<1x10xf32, #tpu.memory_space<vmem>>, %arg5: memref<2x10xf32, #tpu.memory_space<vmem>>) attributes {dimension_semantics = [], scalar_prefetch = 0 : i64, scratch_operands = 0 : i64, tpu.core_type = #tpu.core_type<tc>} {
    %c0 = arith.constant 0 : index
    %c0_0 = arith.constant 0 : index
    %0 = vector.load %arg0[%c0, %c0_0] : memref<2x784xf32, #tpu.memory_space<vmem>>, vector<2x784xf32>
    %1 = vector.extract_strided_slice %0 {offsets = [0, 0], sizes = [2, 668], strides = [1, 1]} : vector<2x784xf32> to vector<2x668xf32>
    %c0_1 = arith.constant 0 : index
    %c0_2 = arith.constant 0 : index
    %2 = memref.load %arg1[%c0_1, %c0_2] : memref<5x5xf32, #tpu.memory_space<smem>>
    %3 = vector.broadcast %2 : f32 to vector<2x668xf32>
    %4 = arith.mulf %1, %3 : vector<2x668xf32>
    %5 = vector.extract_strided_slice %0 {offsets = [0, 1], sizes = [2, 668], strides = [1, 1]} : vector<2x784xf32> to vector<2x668xf32>
    %c0_3 = arith.constant 0 : index
    %c1 = arith.constant 1 : index
    %6 = memref.load %arg1[%c0_3, %c1] : memref<5x5xf32, #tpu.memory_space<smem>>
    %7 = vector.broadcast %6 : f32 to vector<2x668xf32>
    %8 = arith.mulf %5, %7 : vector<2x668xf32>
    %9 = arith.addf %4, %8 : vector<2x668xf32>
    %10 = vector.extract_strided_slice %0 {offsets = [0, 2], sizes = [2, 668], strides = [1, 1]} : vector<2x784xf32> to vector<2x668xf32>
    %c0_4 = arith.constant 0 : index
    %c2 = arith.constant 2 : index
    %11 = memref.load %arg1[%c0_4, %c2] : memref<5x5xf32, #tpu.memory_space<smem>>
    %12 = vector.broadcast %11 : f32 to vector<2x668xf32>
    %13 = arith.mulf %10, %12 : vector<2x668xf32>
    %14 = arith.addf %9, %13 : vector<2x668xf32>
    %15 = vector.extract_strided_slice %0 {offsets = [0, 3], sizes = [2, 668], strides = [1, 1]} : vector<2x784xf32> to vector<2x668xf32>
    %c0_5 = arith.constant 0 : index
    %c3 = arith.constant 3 : index
    %16 = memref.load %arg1[%c0_5, %c3] : memref<5x5xf32, #tpu.memory_space<smem>>
    %17 = vector.broadcast %16 : f32 to vector<2x668xf32>
    %18 = arith.mulf %15, %17 : vector<2x668xf32>
    %19 = arith.addf %14, %18 : vector<2x668xf32>
    %20 = vector.extract_strided_slice %0 {offsets = [0, 4], sizes = [2, 668], strides = [1, 1]} : vector<2x784xf32> to vector<2x668xf32>
    %c0_6 = arith.constant 0 : index
    %c4 = arith.constant 4 : index
    %21 = memref.load %arg1[%c0_6, %c4] : memref<5x5xf32, #tpu.memory_space<smem>>
    %22 = vector.broadcast %21 : f32 to vector<2x668xf32>
    %23 = arith.mulf %20, %22 : vector<2x668xf32>
    %24 = arith.addf %19, %23 : vector<2x668xf32>
    %25 = vector.extract_strided_slice %0 {offsets = [0, 28], sizes = [2, 668], strides = [1, 1]} : vector<2x784xf32> to vector<2x668xf32>
    %c1_7 = arith.constant 1 : index
    %c0_8 = arith.constant 0 : index
    %26 = memref.load %arg1[%c1_7, %c0_8] : memref<5x5xf32, #tpu.memory_space<smem>>
    %27 = vector.broadcast %26 : f32 to vector<2x668xf32>
    %28 = arith.mulf %25, %27 : vector<2x668xf32>
    %29 = arith.addf %24, %28 : vector<2x668xf32>
    %30 = vector.extract_strided_slice %0 {offsets = [0, 29], sizes = [2, 668], strides = [1, 1]} : vector<2x784xf32> to vector<2x668xf32>
    %c1_9 = arith.constant 1 : index
    %c1_10 = arith.constant 1 : index
    %31 = memref.load %arg1[%c1_9, %c1_10] : memref<5x5xf32, #tpu.memory_space<smem>>
    %32 = vector.broadcast %31 : f32 to vector<2x668xf32>
    %33 = arith.mulf %30, %32 : vector<2x668xf32>
    %34 = arith.addf %29, %33 : vector<2x668xf32>
    %35 = vector.extract_strided_slice %0 {offsets = [0, 30], sizes = [2, 668], strides = [1, 1]} : vector<2x784xf32> to vector<2x668xf32>
    %c1_11 = arith.constant 1 : index
    %c2_12 = arith.constant 2 : index
    %36 = memref.load %arg1[%c1_11, %c2_12] : memref<5x5xf32, #tpu.memory_space<smem>>
    %37 = vector.broadcast %36 : f32 to vector<2x668xf32>
    %38 = arith.mulf %35, %37 : vector<2x668xf32>
    %39 = arith.addf %34, %38 : vector<2x668xf32>
    %40 = vector.extract_strided_slice %0 {offsets = [0, 31], sizes = [2, 668], strides = [1, 1]} : vector<2x784xf32> to vector<2x668xf32>
    %c1_13 = arith.constant 1 : index
    %c3_14 = arith.constant 3 : index
    %41 = memref.load %arg1[%c1_13, %c3_14] : memref<5x5xf32, #tpu.memory_space<smem>>
    %42 = vector.broadcast %41 : f32 to vector<2x668xf32>
    %43 = arith.mulf %40, %42 : vector<2x668xf32>
    %44 = arith.addf %39, %43 : vector<2x668xf32>
    %45 = vector.extract_strided_slice %0 {offsets = [0, 32], sizes = [2, 668], strides = [1, 1]} : vector<2x784xf32> to vector<2x668xf32>
    %c1_15 = arith.constant 1 : index
    %c4_16 = arith.constant 4 : index
    %46 = memref.load %arg1[%c1_15, %c4_16] : memref<5x5xf32, #tpu.memory_space<smem>>
    %47 = vector.broadcast %46 : f32 to vector<2x668xf32>
    %48 = arith.mulf %45, %47 : vector<2x668xf32>
    %49 = arith.addf %44, %48 : vector<2x668xf32>
    %50 = vector.extract_strided_slice %0 {offsets = [0, 56], sizes = [2, 668], strides = [1, 1]} : vector<2x784xf32> to vector<2x668xf32>
    %c2_17 = arith.constant 2 : index
    %c0_18 = arith.constant 0 : index
    %51 = memref.load %arg1[%c2_17, %c0_18] : memref<5x5xf32, #tpu.memory_space<smem>>
    %52 = vector.broadcast %51 : f32 to vector<2x668xf32>
    %53 = arith.mulf %50, %52 : vector<2x668xf32>
    %54 = arith.addf %49, %53 : vector<2x668xf32>
    %55 = vector.extract_strided_slice %0 {offsets = [0, 57], sizes = [2, 668], strides = [1, 1]} : vector<2x784xf32> to vector<2x668xf32>
    %c2_19 = arith.constant 2 : index
    %c1_20 = arith.constant 1 : index
    %56 = memref.load %arg1[%c2_19, %c1_20] : memref<5x5xf32, #tpu.memory_space<smem>>
    %57 = vector.broadcast %56 : f32 to vector<2x668xf32>
    %58 = arith.mulf %55, %57 : vector<2x668xf32>
    %59 = arith.addf %54, %58 : vector<2x668xf32>
    %60 = vector.extract_strided_slice %0 {offsets = [0, 58], sizes = [2, 668], strides = [1, 1]} : vector<2x784xf32> to vector<2x668xf32>
    %c2_21 = arith.constant 2 : index
    %c2_22 = arith.constant 2 : index
    %61 = memref.load %arg1[%c2_21, %c2_22] : memref<5x5xf32, #tpu.memory_space<smem>>
    %62 = vector.broadcast %61 : f32 to vector<2x668xf32>
    %63 = arith.mulf %60, %62 : vector<2x668xf32>
    %64 = arith.addf %59, %63 : vector<2x668xf32>
    %65 = vector.extract_strided_slice %0 {offsets = [0, 59], sizes = [2, 668], strides = [1, 1]} : vector<2x784xf32> to vector<2x668xf32>
    %c2_23 = arith.constant 2 : index
    %c3_24 = arith.constant 3 : index
    %66 = memref.load %arg1[%c2_23, %c3_24] : memref<5x5xf32, #tpu.memory_space<smem>>
    %67 = vector.broadcast %66 : f32 to vector<2x668xf32>
    %68 = arith.mulf %65, %67 : vector<2x668xf32>
    %69 = arith.addf %64, %68 : vector<2x668xf32>
    %70 = vector.extract_strided_slice %0 {offsets = [0, 60], sizes = [2, 668], strides = [1, 1]} : vector<2x784xf32> to vector<2x668xf32>
    %c2_25 = arith.constant 2 : index
    %c4_26 = arith.constant 4 : index
    %71 = memref.load %arg1[%c2_25, %c4_26] : memref<5x5xf32, #tpu.memory_space<smem>>
    %72 = vector.broadcast %71 : f32 to vector<2x668xf32>
    %73 = arith.mulf %70, %72 : vector<2x668xf32>
    %74 = arith.addf %69, %73 : vector<2x668xf32>
    %75 = vector.extract_strided_slice %0 {offsets = [0, 84], sizes = [2, 668], strides = [1, 1]} : vector<2x784xf32> to vector<2x668xf32>
    %c3_27 = arith.constant 3 : index
    %c0_28 = arith.constant 0 : index
    %76 = memref.load %arg1[%c3_27, %c0_28] : memref<5x5xf32, #tpu.memory_space<smem>>
    %77 = vector.broadcast %76 : f32 to vector<2x668xf32>
    %78 = arith.mulf %75, %77 : vector<2x668xf32>
    %79 = arith.addf %74, %78 : vector<2x668xf32>
    %80 = vector.extract_strided_slice %0 {offsets = [0, 85], sizes = [2, 668], strides = [1, 1]} : vector<2x784xf32> to vector<2x668xf32>
    %c3_29 = arith.constant 3 : index
    %c1_30 = arith.constant 1 : index
    %81 = memref.load %arg1[%c3_29, %c1_30] : memref<5x5xf32, #tpu.memory_space<smem>>
    %82 = vector.broadcast %81 : f32 to vector<2x668xf32>
    %83 = arith.mulf %80, %82 : vector<2x668xf32>
    %84 = arith.addf %79, %83 : vector<2x668xf32>
    %85 = vector.extract_strided_slice %0 {offsets = [0, 86], sizes = [2, 668], strides = [1, 1]} : vector<2x784xf32> to vector<2x668xf32>
    %c3_31 = arith.constant 3 : index
    %c2_32 = arith.constant 2 : index
    %86 = memref.load %arg1[%c3_31, %c2_32] : memref<5x5xf32, #tpu.memory_space<smem>>
    %87 = vector.broadcast %86 : f32 to vector<2x668xf32>
    %88 = arith.mulf %85, %87 : vector<2x668xf32>
    %89 = arith.addf %84, %88 : vector<2x668xf32>
    %90 = vector.extract_strided_slice %0 {offsets = [0, 87], sizes = [2, 668], strides = [1, 1]} : vector<2x784xf32> to vector<2x668xf32>
    %c3_33 = arith.constant 3 : index
    %c3_34 = arith.constant 3 : index
    %91 = memref.load %arg1[%c3_33, %c3_34] : memref<5x5xf32, #tpu.memory_space<smem>>
    %92 = vector.broadcast %91 : f32 to vector<2x668xf32>
    %93 = arith.mulf %90, %92 : vector<2x668xf32>
    %94 = arith.addf %89, %93 : vector<2x668xf32>
    %95 = vector.extract_strided_slice %0 {offsets = [0, 88], sizes = [2, 668], strides = [1, 1]} : vector<2x784xf32> to vector<2x668xf32>
    %c3_35 = arith.constant 3 : index
    %c4_36 = arith.constant 4 : index
    %96 = memref.load %arg1[%c3_35, %c4_36] : memref<5x5xf32, #tpu.memory_space<smem>>
    %97 = vector.broadcast %96 : f32 to vector<2x668xf32>
    %98 = arith.mulf %95, %97 : vector<2x668xf32>
    %99 = arith.addf %94, %98 : vector<2x668xf32>
    %100 = vector.extract_strided_slice %0 {offsets = [0, 112], sizes = [2, 668], strides = [1, 1]} : vector<2x784xf32> to vector<2x668xf32>
    %c4_37 = arith.constant 4 : index
    %c0_38 = arith.constant 0 : index
    %101 = memref.load %arg1[%c4_37, %c0_38] : memref<5x5xf32, #tpu.memory_space<smem>>
    %102 = vector.broadcast %101 : f32 to vector<2x668xf32>
    %103 = arith.mulf %100, %102 : vector<2x668xf32>
    %104 = arith.addf %99, %103 : vector<2x668xf32>
    %105 = vector.extract_strided_slice %0 {offsets = [0, 113], sizes = [2, 668], strides = [1, 1]} : vector<2x784xf32> to vector<2x668xf32>
    %c4_39 = arith.constant 4 : index
    %c1_40 = arith.constant 1 : index
    %106 = memref.load %arg1[%c4_39, %c1_40] : memref<5x5xf32, #tpu.memory_space<smem>>
    %107 = vector.broadcast %106 : f32 to vector<2x668xf32>
    %108 = arith.mulf %105, %107 : vector<2x668xf32>
    %109 = arith.addf %104, %108 : vector<2x668xf32>
    %110 = vector.extract_strided_slice %0 {offsets = [0, 114], sizes = [2, 668], strides = [1, 1]} : vector<2x784xf32> to vector<2x668xf32>
    %c4_41 = arith.constant 4 : index
    %c2_42 = arith.constant 2 : index
    %111 = memref.load %arg1[%c4_41, %c2_42] : memref<5x5xf32, #tpu.memory_space<smem>>
    %112 = vector.broadcast %111 : f32 to vector<2x668xf32>
    %113 = arith.mulf %110, %112 : vector<2x668xf32>
    %114 = arith.addf %109, %113 : vector<2x668xf32>
    %115 = vector.extract_strided_slice %0 {offsets = [0, 115], sizes = [2, 668], strides = [1, 1]} : vector<2x784xf32> to vector<2x668xf32>
    %c4_43 = arith.constant 4 : index
    %c3_44 = arith.constant 3 : index
    %116 = memref.load %arg1[%c4_43, %c3_44] : memref<5x5xf32, #tpu.memory_space<smem>>
    %117 = vector.broadcast %116 : f32 to vector<2x668xf32>
    %118 = arith.mulf %115, %117 : vector<2x668xf32>
    %119 = arith.addf %114, %118 : vector<2x668xf32>
    %120 = vector.extract_strided_slice %0 {offsets = [0, 116], sizes = [2, 668], strides = [1, 1]} : vector<2x784xf32> to vector<2x668xf32>
    %c4_45 = arith.constant 4 : index
    %c4_46 = arith.constant 4 : index
    %121 = memref.load %arg1[%c4_45, %c4_46] : memref<5x5xf32, #tpu.memory_space<smem>>
    %122 = vector.broadcast %121 : f32 to vector<2x668xf32>
    %123 = arith.mulf %120, %122 : vector<2x668xf32>
    %124 = arith.addf %119, %123 : vector<2x668xf32>
    %c0_47 = arith.constant 0 : index
    %125 = memref.load %arg2[%c0_47] : memref<1xf32, #tpu.memory_space<smem>>
    %126 = vector.broadcast %125 : f32 to vector<2x668xf32>
    %127 = arith.addf %124, %126 : vector<2x668xf32>
    %cst = arith.constant 0.000000e+00 : f32
    %128 = vector.broadcast %cst : f32 to vector<2x668xf32>
    %129 = arith.maximumf %127, %128 : vector<2x668xf32>
    %130 = vector.extract_strided_slice %129 {offsets = [0, 0], sizes = [2, 639], strides = [1, 1]} : vector<2x668xf32> to vector<2x639xf32>
    %131 = vector.extract_strided_slice %129 {offsets = [0, 1], sizes = [2, 639], strides = [1, 1]} : vector<2x668xf32> to vector<2x639xf32>
    %132 = arith.maximumf %130, %131 : vector<2x639xf32>
    %133 = vector.extract_strided_slice %129 {offsets = [0, 28], sizes = [2, 639], strides = [1, 1]} : vector<2x668xf32> to vector<2x639xf32>
    %134 = vector.extract_strided_slice %129 {offsets = [0, 29], sizes = [2, 639], strides = [1, 1]} : vector<2x668xf32> to vector<2x639xf32>
    %135 = arith.maximumf %133, %134 : vector<2x639xf32>
    %136 = arith.maximumf %132, %135 : vector<2x639xf32>
    %c0_48 = arith.constant 0 : index
    %c0_49 = arith.constant 0 : index
    %137 = vector.load %arg3[%c0_48, %c0_49] : memref<639x10xf32, #tpu.memory_space<vmem>>, vector<639x10xf32>
    %cst_50 = arith.constant dense<0.000000e+00> : vector<2x10xf32>
    %138 = tpu.matmul %136, %137, %cst_50 {dimension_numbers = #tpu.dot_dimension_numbers<[1], [0], [0], [1], [0, 0, 1, 1], [], []>, precision = #tpu.contract_precision<fp32>} : vector<2x639xf32>, vector<639x10xf32>, vector<2x10xf32> -> vector<2x10xf32>
    %c0_51 = arith.constant 0 : index
    %c0_52 = arith.constant 0 : index
    %139 = vector.load %arg4[%c0_51, %c0_52] : memref<1x10xf32, #tpu.memory_space<vmem>>, vector<1x10xf32>
    %140 = vector.broadcast %139 : vector<1x10xf32> to vector<2x10xf32>
    %141 = arith.addf %138, %140 : vector<2x10xf32>
    %c0_53 = arith.constant 0 : index
    %c0_54 = arith.constant 0 : index
    %142 = vector.load %arg5[%c0_53, %c0_54] : memref<2x10xf32, #tpu.memory_space<vmem>>, vector<2x10xf32>
    tpu.vector_store %arg5[%c0_53, %c0_54], %141 {strides = array<i32>} : memref<2x10xf32, #tpu.memory_space<vmem>>, vector<2x10xf32>,
    return
  }
}

</mosaic_0001>

<llo_original>
// kernel: small_model.1
$region0: #{small_model.1}
  #allocation0 [shape = 'u32[]', space=smem, size = 0x4, offset = 0x4, fixed_abs, tag = 'smem constant byte address 0x4 - core index']
  #allocation1 [shape = 'u32[144,128]{1,0:T(1,128)}', space=vmem, size = 0x12000, scoped, tag = 'internal scratch']
  #allocation2 [shape = 'f32[1]{0:T(128)S(6)}', space=smem, size = 0x200, scoped, tag = 'scoped memory for small_model.1']
  %s0 = inlined_call_operand.vmem [shape: f32[2,784], index: 0, kind: input, shape index: {}]
  %s1 = inlined_call_operand.vmem [shape: f32[5,5], index: 1, kind: input, shape index: {}]
  %s2 = inlined_call_operand.<no memory space> [shape: f32[1], index: 2, kind: input, shape index: {}]
  %s3 = inlined_call_operand.vmem [shape: f32[639,10], index: 3, kind: input, shape index: {}]
  %s4 = inlined_call_operand.vmem [shape: f32[1,10], index: 4, kind: input, shape index: {}]
  %s5 = inlined_call_operand.hbm [shape: f32[2,10], index: 5, kind: output, shape index: {}]
  %s6 = sld [smem:[#allocation0]]
  $region34: #{small_model.1} parent=0
    _
  %s8 = ssub.s32 1, %s6
  %s9 = scalar_select 0, %s8, %s6
  %10 = sst [smem:[#allocation2]] %s2
  $region1: #{small_model.1} parent=0
    #allocation3 [shape = 'u8[4096]{0}', space=smem, size = 0x1000, scoped, tag = 'input window, operand 1, single buffered']
    #allocation4 [shape = 's32[1]{0}', space=sflag, size = 0x4, scoped, tag = 'scoped memory for small_model.1']
    #allocation5 [shape = 's32[1]{0}', space=sflag, size = 0x4, scoped, tag = 'scoped memory for small_model.1']
    #allocation6 [shape = 'u8[1024]{0}', space=vmem, size = 0x400, scoped, tag = 'output window, operand 0, single buffered']
    %11 = vsyncpa [#allocation5], 0
    %12 = vsyncpa [#allocation4], 0
    // Predicated region
    $region2: #{small_model.1} parent=1 // pred_check
      _
    $region3: #{small_model.1} parent=1 // pred_check_branch
      %14 = sbr.rel (0) target = $region5
    $region4: #{small_model.1} parent=1 // pred_region
      _
    $region5: #{small_model.1} parent=1 // pred_fallthru
      _
    // Predicated region
    $region6: #{small_model.1} parent=1 // pred_check
      _
    $region7: #{small_model.1} parent=1 // pred_check_branch
      %16 = sbr.rel (0) target = $region9
    $region8: #{small_model.1} parent=1 // pred_region
      %s18 = ssub.s32 128, 128
      %19 = vsyncadd [#allocation5], %s18
      %s21 = sshll.u32 %s1, 4
      %s22 = int_to_ptr.vmem [resolvable:$true] %s21
      %24 = dma.vmem_to_smem %s22, 128, [#allocation3], [#allocation5]
    $region9: #{small_model.1} parent=1 // pred_fallthru
      _
    // Predicated region
    $region10: #{small_model.1} parent=1 // pred_check
      _
    $region11: #{small_model.1} parent=1 // pred_check_branch
      %26 = sbr.rel (0) target = $region13
    $region12: #{small_model.1} parent=1 // pred_region
      _
    $region13: #{small_model.1} parent=1 // pred_fallthru
      _
    // Predicated region
    $region14: #{small_model.1} parent=1 // pred_check
      _
    $region15: #{small_model.1} parent=1 // pred_check_branch
      %28 = sbr.rel (0) target = $region17
    $region16: #{small_model.1} parent=1 // pred_region
      _
    $region17: #{small_model.1} parent=1 // pred_fallthru
      _
    // Predicated region
    $region18: #{small_model.1} parent=1 // pred_check
      _
    $region19: #{small_model.1} parent=1 // pred_check_branch
      %30 = sbr.rel (0) target = $region21
    $region20: #{small_model.1} parent=1 // pred_region
      _
    $region21: #{small_model.1} parent=1 // pred_fallthru
      _
    // Predicated region
    $region22: #{small_model.1} parent=1 // pred_check
      _
    $region23: #{small_model.1} parent=1 // pred_check_branch
      %32 = sbr.rel (0) target = $region25
    $region24: #{small_model.1} parent=1 // pred_region
      %33 = dma.done [#allocation5], 128
    $region25: #{small_model.1} parent=1 // pred_fallthru
      _
    %34 = sfence
    %v35 = vld [vmem:[%s0] sm:$0xff]
    %v36 = vld [vmem:[%s0 + $0x8] sm:$0x3f]
    %s37 = sld [smem:[#allocation3]]
    %v38 = vstv %s37
    %v39 = vmul.f32 %v35, %v38
    %v40 = vmul.f32 %v36, %v38
    %s41 = sld [smem:[#allocation3 + $0x1]]
    %v42 = vstv %s41
    %v43 = vmul.f32 %v35, %v42
    %v44 = vmul.f32 %v36, %v42
    %47 = vrot.lane.b32.xlu0 %v43, 127
    %v48 = vpop.permute.xlu0 %47
    %49 = vrot.lane.b32.xlu0 %v44, 127
    %v50 = vpop.permute.xlu0 %49
    %v51 = vrot.slane %v48, 2
    %v52 = vrot.slane %v50, 2
    %vm53 = vcmask 1045504
    %v54 = vsel %vm53, %v51, %v52
    %vm55 = vcmask 1039360
    %v56 = vsel %vm55, %v48, %v54
    %v57 = vsel %vm55, %v50, %v52
    %v60 = vadd.f32 %v39, %v56
    %v61 = vadd.f32 %v40, %v57
    %s62 = sld [smem:[#allocation3 + $0x2]]
    %v63 = vstv %s62
    %v64 = vmul.f32 %v35, %v63
    %v65 = vmul.f32 %v36, %v63
    %68 = vrot.lane.b32.xlu0 %v64, 126
    %v69 = vpop.permute.xlu0 %68
    %70 = vrot.lane.b32.xlu0 %v65, 126
    %v71 = vpop.permute.xlu0 %70
    %v72 = vrot.slane %v69, 2
    %v73 = vrot.slane %v71, 2
    %v74 = vsel %vm53, %v72, %v73
    %vm75 = vcmask 1031168
    %v76 = vsel %vm75, %v69, %v74
    %v77 = vsel %vm75, %v71, %v73
    %v80 = vadd.f32 %v60, %v76
    %v81 = vadd.f32 %v61, %v77
    %s82 = sld [smem:[#allocation3 + $0x3]]
    %v83 = vstv %s82
    %v84 = vmul.f32 %v35, %v83
    %v85 = vmul.f32 %v36, %v83
    %88 = vrot.lane.b32.xlu0 %v84, 125
    %v89 = vpop.permute.xlu0 %88
    %90 = vrot.lane.b32.xlu0 %v85, 125
    %v91 = vpop.permute.xlu0 %90
    %v92 = vrot.slane %v89, 2
    %v93 = vrot.slane %v91, 2
    %v94 = vsel %vm53, %v92, %v93
    %vm95 = vcmask 1022976
    %v96 = vsel %vm95, %v89, %v94
    %v97 = vsel %vm95, %v91, %v93
    %v100 = vadd.f32 %v80, %v96
    %v101 = vadd.f32 %v81, %v97
    %s102 = sld [smem:[#allocation3 + $0x4]]
    %v103 = vstv %s102
    %v104 = vmul.f32 %v35, %v103
    %v105 = vmul.f32 %v36, %v103
    %108 = vrot.lane.b32.xlu0 %v104, 124
    %v109 = vpop.permute.xlu0 %108
    %110 = vrot.lane.b32.xlu0 %v105, 124
    %v111 = vpop.permute.xlu0 %110
    %v112 = vrot.slane %v109, 2
    %v113 = vrot.slane %v111, 2
    %v114 = vsel %vm53, %v112, %v113
    %vm115 = vcmask 1014784
    %v116 = vsel %vm115, %v109, %v114
    %v117 = vsel %vm115, %v111, %v113
    %v120 = vadd.f32 %v100, %v116
    %v121 = vadd.f32 %v101, %v117
    %s122 = sld [smem:[#allocation3 + $0x80]]
    %v123 = vstv %s122
    %v124 = vmul.f32 %v35, %v123
    %v125 = vmul.f32 %v36, %v123
    %128 = vrot.lane.b32.xlu0 %v124, 100
    %v129 = vpop.permute.xlu0 %128
    %130 = vrot.lane.b32.xlu0 %v125, 100
    %v131 = vpop.permute.xlu0 %130
    %v132 = vrot.slane %v129, 2
    %v133 = vrot.slane %v131, 2
    %v134 = vsel %vm53, %v132, %v133
    %vm135 = vcmask 818176
    %v136 = vsel %vm135, %v129, %v134
    %v137 = vsel %vm135, %v131, %v133
    %v140 = vadd.f32 %v120, %v136
    %v141 = vadd.f32 %v121, %v137
    %s142 = sld [smem:[#allocation3 + $0x81]]
    %v143 = vstv %s142
    %v144 = vmul.f32 %v35, %v143
    %v145 = vmul.f32 %v36, %v143
    %148 = vrot.lane.b32.xlu0 %v144, 99
    %v149 = vpop.permute.xlu0 %148
    %150 = vrot.lane.b32.xlu0 %v145, 99
    %v151 = vpop.permute.xlu0 %150
    %v152 = vrot.slane %v149, 2
    %v153 = vrot.slane %v151, 2
    %v154 = vsel %vm53, %v152, %v153
    %vm155 = vcmask 809984
    %v156 = vsel %vm155, %v149, %v154
    %v157 = vsel %vm155, %v151, %v153
    %v160 = vadd.f32 %v140, %v156
    %v161 = vadd.f32 %v141, %v157
    %s162 = sld [smem:[#allocation3 + $0x82]]
    %v163 = vstv %s162
    %v164 = vmul.f32 %v35, %v163
    %v165 = vmul.f32 %v36, %v163
    %168 = vrot.lane.b32.xlu0 %v164, 98
    %v169 = vpop.permute.xlu0 %168
    %170 = vrot.lane.b32.xlu0 %v165, 98
    %v171 = vpop.permute.xlu0 %170
    %v172 = vrot.slane %v169, 2
    %v173 = vrot.slane %v171, 2
    %v174 = vsel %vm53, %v172, %v173
    %vm175 = vcmask 801792
    %v176 = vsel %vm175, %v169, %v174
    %v177 = vsel %vm175, %v171, %v173
    %v180 = vadd.f32 %v160, %v176
    %v181 = vadd.f32 %v161, %v177
    %s182 = sld [smem:[#allocation3 + $0x83]]
    %v183 = vstv %s182
    %v184 = vmul.f32 %v35, %v183
    %v185 = vmul.f32 %v36, %v183
    %188 = vrot.lane.b32.xlu0 %v184, 97
    %v189 = vpop.permute.xlu0 %188
    %190 = vrot.lane.b32.xlu0 %v185, 97
    %v191 = vpop.permute.xlu0 %190
    %v192 = vrot.slane %v189, 2
    %v193 = vrot.slane %v191, 2
    %v194 = vsel %vm53, %v192, %v193
    %vm195 = vcmask 793600
    %v196 = vsel %vm195, %v189, %v194
    %v197 = vsel %vm195, %v191, %v193
    %v200 = vadd.f32 %v180, %v196
    %v201 = vadd.f32 %v181, %v197
    %s202 = sld [smem:[#allocation3 + $0x84]]
    %v203 = vstv %s202
    %v204 = vmul.f32 %v35, %v203
    %v205 = vmul.f32 %v36, %v203
    %208 = vrot.lane.b32.xlu0 %v204, 96
    %v209 = vpop.permute.xlu0 %208
    %210 = vrot.lane.b32.xlu0 %v205, 96
    %v211 = vpop.permute.xlu0 %210
    %v212 = vrot.slane %v209, 2
    %v213 = vrot.slane %v211, 2
    %v214 = vsel %vm53, %v212, %v213
    %vm215 = vcmask 785408
    %v216 = vsel %vm215, %v209, %v214
    %v217 = vsel %vm215, %v211, %v213
    %v220 = vadd.f32 %v200, %v216
    %v221 = vadd.f32 %v201, %v217
    %s222 = sld [smem:[#allocation3 + $0x100]]
    %v223 = vstv %s222
    %v224 = vmul.f32 %v35, %v223
    %v225 = vmul.f32 %v36, %v223
    %228 = vrot.lane.b32.xlu0 %v224, 72
    %v229 = vpop.permute.xlu0 %228
    %230 = vrot.lane.b32.xlu0 %v225, 72
    %v231 = vpop.permute.xlu0 %230
    %v232 = vrot.slane %v229, 2
    %v233 = vrot.slane %v231, 2
    %v234 = vsel %vm53, %v232, %v233
    %vm235 = vcmask 588800
    %v236 = vsel %vm235, %v229, %v234
    %v237 = vsel %vm235, %v231, %v233
    %v240 = vadd.f32 %v220, %v236
    %v241 = vadd.f32 %v221, %v237
    %s242 = sld [smem:[#allocation3 + $0x101]]
    %v243 = vstv %s242
    %v244 = vmul.f32 %v35, %v243
    %v245 = vmul.f32 %v36, %v243
    %248 = vrot.lane.b32.xlu0 %v244, 71
    %v249 = vpop.permute.xlu0 %248
    %250 = vrot.lane.b32.xlu0 %v245, 71
    %v251 = vpop.permute.xlu0 %250
    %v252 = vrot.slane %v249, 2
    %v253 = vrot.slane %v251, 2
    %v254 = vsel %vm53, %v252, %v253
    %vm255 = vcmask 580608
    %v256 = vsel %vm255, %v249, %v254
    %v257 = vsel %vm255, %v251, %v253
    %v260 = vadd.f32 %v240, %v256
    %v261 = vadd.f32 %v241, %v257
    %s262 = sld [smem:[#allocation3 + $0x102]]
    %v263 = vstv %s262
    %v264 = vmul.f32 %v35, %v263
    %v265 = vmul.f32 %v36, %v263
    %268 = vrot.lane.b32.xlu0 %v264, 70
    %v269 = vpop.permute.xlu0 %268
    %270 = vrot.lane.b32.xlu0 %v265, 70
    %v271 = vpop.permute.xlu0 %270
    %v272 = vrot.slane %v269, 2
    %v273 = vrot.slane %v271, 2
    %v274 = vsel %vm53, %v272, %v273
    %vm275 = vcmask 572416
    %v276 = vsel %vm275, %v269, %v274
    %v277 = vsel %vm275, %v271, %v273
    %v280 = vadd.f32 %v260, %v276
    %v281 = vadd.f32 %v261, %v277
    %s282 = sld [smem:[#allocation3 + $0x103]]
    %v283 = vstv %s282
    %v284 = vmul.f32 %v35, %v283
    %v285 = vmul.f32 %v36, %v283
    %288 = vrot.lane.b32.xlu0 %v284, 69
    %v289 = vpop.permute.xlu0 %288
    %290 = vrot.lane.b32.xlu0 %v285, 69
    %v291 = vpop.permute.xlu0 %290
    %v292 = vrot.slane %v289, 2
    %v293 = vrot.slane %v291, 2
    %v294 = vsel %vm53, %v292, %v293
    %vm295 = vcmask 564224
    %v296 = vsel %vm295, %v289, %v294
    %v297 = vsel %vm295, %v291, %v293
    %v300 = vadd.f32 %v280, %v296
    %v301 = vadd.f32 %v281, %v297
    %s302 = sld [smem:[#allocation3 + $0x104]]
    %v303 = vstv %s302
    %v304 = vmul.f32 %v35, %v303
    %v305 = vmul.f32 %v36, %v303
    %308 = vrot.lane.b32.xlu0 %v304, 68
    %v309 = vpop.permute.xlu0 %308
    %310 = vrot.lane.b32.xlu0 %v305, 68
    %v311 = vpop.permute.xlu0 %310
    %v312 = vrot.slane %v309, 2
    %v313 = vrot.slane %v311, 2
    %v314 = vsel %vm53, %v312, %v313
    %vm315 = vcmask 556032
    %v316 = vsel %vm315, %v309, %v314
    %v317 = vsel %vm315, %v311, %v313
    %v320 = vadd.f32 %v300, %v316
    %v321 = vadd.f32 %v301, %v317
    %s322 = sld [smem:[#allocation3 + $0x180]]
    %v323 = vstv %s322
    %v324 = vmul.f32 %v35, %v323
    %v325 = vmul.f32 %v36, %v323
    %328 = vrot.lane.b32.xlu0 %v324, 44
    %v329 = vpop.permute.xlu0 %328
    %330 = vrot.lane.b32.xlu0 %v325, 44
    %v331 = vpop.permute.xlu0 %330
    %v332 = vrot.slane %v329, 2
    %v333 = vrot.slane %v331, 2
    %v334 = vsel %vm53, %v332, %v333
    %vm335 = vcmask 359424
    %v336 = vsel %vm335, %v329, %v334
    %v337 = vsel %vm335, %v331, %v333
    %v340 = vadd.f32 %v320, %v336
    %v341 = vadd.f32 %v321, %v337
    %s342 = sld [smem:[#allocation3 + $0x181]]
    %v343 = vstv %s342
    %v344 = vmul.f32 %v35, %v343
    %v345 = vmul.f32 %v36, %v343
    %348 = vrot.lane.b32.xlu0 %v344, 43
    %v349 = vpop.permute.xlu0 %348
    %350 = vrot.lane.b32.xlu0 %v345, 43
    %v351 = vpop.permute.xlu0 %350
    %v352 = vrot.slane %v349, 2
    %v353 = vrot.slane %v351, 2
    %v354 = vsel %vm53, %v352, %v353
    %vm355 = vcmask 351232
    %v356 = vsel %vm355, %v349, %v354
    %v357 = vsel %vm355, %v351, %v353
    %v360 = vadd.f32 %v340, %v356
    %v361 = vadd.f32 %v341, %v357
    %s362 = sld [smem:[#allocation3 + $0x182]]
    %v363 = vstv %s362
    %v364 = vmul.f32 %v35, %v363
    %v365 = vmul.f32 %v36, %v363
    %368 = vrot.lane.b32.xlu0 %v364, 42
    %v369 = vpop.permute.xlu0 %368
    %370 = vrot.lane.b32.xlu0 %v365, 42
    %v371 = vpop.permute.xlu0 %370
    %v372 = vrot.slane %v369, 2
    %v373 = vrot.slane %v371, 2
    %v374 = vsel %vm53, %v372, %v373
    %vm375 = vcmask 343040
    %v376 = vsel %vm375, %v369, %v374
    %v377 = vsel %vm375, %v371, %v373
    %v380 = vadd.f32 %v360, %v376
    %v381 = vadd.f32 %v361, %v377
    %s382 = sld [smem:[#allocation3 + $0x183]]
    %v383 = vstv %s382
    %v384 = vmul.f32 %v35, %v383
    %v385 = vmul.f32 %v36, %v383
    %388 = vrot.lane.b32.xlu0 %v384, 41
    %v389 = vpop.permute.xlu0 %388
    %390 = vrot.lane.b32.xlu0 %v385, 41
    %v391 = vpop.permute.xlu0 %390
    %v392 = vrot.slane %v389, 2
    %v393 = vrot.slane %v391, 2
    %v394 = vsel %vm53, %v392, %v393
    %vm395 = vcmask 334848
    %v396 = vsel %vm395, %v389, %v394
    %v397 = vsel %vm395, %v391, %v393
    %v400 = vadd.f32 %v380, %v396
    %v401 = vadd.f32 %v381, %v397
    %s402 = sld [smem:[#allocation3 + $0x184]]
    %v403 = vstv %s402
    %v404 = vmul.f32 %v35, %v403
    %v405 = vmul.f32 %v36, %v403
    %408 = vrot.lane.b32.xlu0 %v404, 40
    %v409 = vpop.permute.xlu0 %408
    %410 = vrot.lane.b32.xlu0 %v405, 40
    %v411 = vpop.permute.xlu0 %410
    %v412 = vrot.slane %v409, 2
    %v413 = vrot.slane %v411, 2
    %v414 = vsel %vm53, %v412, %v413
    %vm415 = vcmask 326656
    %v416 = vsel %vm415, %v409, %v414
    %v417 = vsel %vm415, %v411, %v413
    %v420 = vadd.f32 %v400, %v416
    %v421 = vadd.f32 %v401, %v417
    %s422 = sld [smem:[#allocation3 + $0x200]]
    %v423 = vstv %s422
    %v424 = vmul.f32 %v35, %v423
    %v425 = vmul.f32 %v36, %v423
    %428 = vrot.lane.b32.xlu0 %v424, 16
    %v429 = vpop.permute.xlu0 %428
    %430 = vrot.lane.b32.xlu0 %v425, 16
    %v431 = vpop.permute.xlu0 %430
    %v432 = vrot.slane %v429, 2
    %v433 = vrot.slane %v431, 2
    %v434 = vsel %vm53, %v432, %v433
    %vm435 = vcmask 130048
    %v436 = vsel %vm435, %v429, %v434
    %v437 = vsel %vm435, %v431, %v433
    %v440 = vadd.f32 %v420, %v436
    %v441 = vadd.f32 %v421, %v437
    %s442 = sld [smem:[#allocation3 + $0x201]]
    %v443 = vstv %s442
    %v444 = vmul.f32 %v35, %v443
    %v445 = vmul.f32 %v36, %v443
    %448 = vrot.lane.b32.xlu0 %v444, 15
    %v449 = vpop.permute.xlu0 %448
    %450 = vrot.lane.b32.xlu0 %v445, 15
    %v451 = vpop.permute.xlu0 %450
    %v452 = vrot.slane %v449, 2
    %v453 = vrot.slane %v451, 2
    %v454 = vsel %vm53, %v452, %v453
    %vm455 = vcmask 121856
    %v456 = vsel %vm455, %v449, %v454
    %v457 = vsel %vm455, %v451, %v453
    %v460 = vadd.f32 %v440, %v456
    %v461 = vadd.f32 %v441, %v457
    %s462 = sld [smem:[#allocation3 + $0x202]]
    %v463 = vstv %s462
    %v464 = vmul.f32 %v35, %v463
    %v465 = vmul.f32 %v36, %v463
    %468 = vrot.lane.b32.xlu0 %v464, 14
    %v469 = vpop.permute.xlu0 %468
    %470 = vrot.lane.b32.xlu0 %v465, 14
    %v471 = vpop.permute.xlu0 %470
    %v472 = vrot.slane %v469, 2
    %v473 = vrot.slane %v471, 2
    %v474 = vsel %vm53, %v472, %v473
    %vm475 = vcmask 113664
    %v476 = vsel %vm475, %v469, %v474
    %v477 = vsel %vm475, %v471, %v473
    %v480 = vadd.f32 %v460, %v476
    %v481 = vadd.f32 %v461, %v477
    %s482 = sld [smem:[#allocation3 + $0x203]]
    %v483 = vstv %s482
    %v484 = vmul.f32 %v35, %v483
    %v485 = vmul.f32 %v36, %v483
    %488 = vrot.lane.b32.xlu0 %v484, 13
    %v489 = vpop.permute.xlu0 %488
    %490 = vrot.lane.b32.xlu0 %v485, 13
    %v491 = vpop.permute.xlu0 %490
    %v492 = vrot.slane %v489, 2
    %v493 = vrot.slane %v491, 2
    %v494 = vsel %vm53, %v492, %v493
    %vm495 = vcmask 105472
    %v496 = vsel %vm495, %v489, %v494
    %v497 = vsel %vm495, %v491, %v493
    %v500 = vadd.f32 %v480, %v496
    %v501 = vadd.f32 %v481, %v497
    %s502 = sld [smem:[#allocation3 + $0x204]]
    %v503 = vstv %s502
    %v504 = vmul.f32 %v35, %v503
    %v505 = vmul.f32 %v36, %v503
    %508 = vrot.lane.b32.xlu0 %v504, 12
    %v509 = vpop.permute.xlu0 %508
    %510 = vrot.lane.b32.xlu0 %v505, 12
    %v511 = vpop.permute.xlu0 %510
    %v512 = vrot.slane %v509, 2
    %v513 = vrot.slane %v511, 2
    %v514 = vsel %vm53, %v512, %v513
    %vm515 = vcmask 97280
    %v516 = vsel %vm515, %v509, %v514
    %v517 = vsel %vm515, %v511, %v513
    %v520 = vadd.f32 %v500, %v516
    %v521 = vadd.f32 %v501, %v517
    %s522 = sld [smem:[#allocation2]]
    %v523 = vstv %s522
    %v524 = vadd.f32 %v520, %v523
    %v525 = vadd.f32 %v521, %v523
    %v526 = vmax.f32 %v524, 0.0
    %v527 = vmax.f32 %v525, 0.0
    %530 = vrot.lane.b32.xlu0 %v526, 127
    %v531 = vpop.permute.xlu0 %530
    %532 = vrot.lane.b32.xlu0 %v527, 127
    %v533 = vpop.permute.xlu0 %532
    %v534 = vrot.slane %v531, 2
    %v535 = vrot.slane %v533, 2
    %v536 = vsel %vm53, %v534, %v535
    %v537 = vsel %vm55, %v531, %v536
    %v540 = vmax.f32 %v526, %v537
    %v541 = vmax.f32 %v527, %v533
    %v542 = vsel %vm55, %v533, %v535
    %v544 = vmax.f32 %v527, %v542
    %547 = vrot.lane.b32.xlu0 %v540, 100
    %v548 = vpop.permute.xlu0 %547
    %549 = vrot.lane.b32.xlu0 %v544, 100
    %v550 = vpop.permute.xlu0 %549
    %v551 = vrot.slane %v548, 2
    %v552 = vrot.slane %v550, 2
    %v553 = vsel %vm53, %v551, %v552
    %v554 = vsel %vm135, %v548, %v553
    %v555 = vsel %vm135, %v550, %v552
    %v558 = vmax.f32 %v540, %v554
    %v559 = vmax.f32 %v541, %v555
    %v560 = vld [vmem:[%s3] sm:$0xff]
    %v561 = vld [vmem:[%s3 + $0x8] sm:$0xff]
    %v562 = vld [vmem:[%s3 + $0x10] sm:$0xff]
    %v563 = vld [vmem:[%s3 + $0x18] sm:$0xff]
    %v564 = vld [vmem:[%s3 + $0x20] sm:$0xff]
    %v565 = vld [vmem:[%s3 + $0x28] sm:$0xff]
    %v566 = vld [vmem:[%s3 + $0x30] sm:$0xff]
    %v567 = vld [vmem:[%s3 + $0x38] sm:$0xff]
    %v568 = vld [vmem:[%s3 + $0x40] sm:$0xff]
    %v569 = vld [vmem:[%s3 + $0x48] sm:$0xff]
    %v570 = vld [vmem:[%s3 + $0x50] sm:$0xff]
    %v571 = vld [vmem:[%s3 + $0x58] sm:$0xff]
    %v572 = vld [vmem:[%s3 + $0x60] sm:$0xff]
    %v573 = vld [vmem:[%s3 + $0x68] sm:$0xff]
    %v574 = vld [vmem:[%s3 + $0x70] sm:$0xff]
    %v575 = vld [vmem:[%s3 + $0x78] sm:$0xff]
    %v576 = vld [vmem:[%s3 + $0x80] sm:$0xff]
    %v577 = vld [vmem:[%s3 + $0x88] sm:$0xff]
    %v578 = vld [vmem:[%s3 + $0x90] sm:$0xff]
    %v579 = vld [vmem:[%s3 + $0x98] sm:$0xff]
    %v580 = vld [vmem:[%s3 + $0xa0] sm:$0xff]
    %v581 = vld [vmem:[%s3 + $0xa8] sm:$0xff]
    %v582 = vld [vmem:[%s3 + $0xb0] sm:$0xff]
    %v583 = vld [vmem:[%s3 + $0xb8] sm:$0xff]
    %v584 = vld [vmem:[%s3 + $0xc0] sm:$0xff]
    %v585 = vld [vmem:[%s3 + $0xc8] sm:$0xff]
    %v586 = vld [vmem:[%s3 + $0xd0] sm:$0xff]
    %v587 = vld [vmem:[%s3 + $0xd8] sm:$0xff]
    %v588 = vld [vmem:[%s3 + $0xe0] sm:$0xff]
    %v589 = vld [vmem:[%s3 + $0xe8] sm:$0xff]
    %v590 = vld [vmem:[%s3 + $0xf0] sm:$0xff]
    %v591 = vld [vmem:[%s3 + $0xf8] sm:$0xff]
    %v592 = vld [vmem:[%s3 + $0x100] sm:$0xff]
    %v593 = vld [vmem:[%s3 + $0x108] sm:$0xff]
    %v594 = vld [vmem:[%s3 + $0x110] sm:$0xff]
    %v595 = vld [vmem:[%s3 + $0x118] sm:$0xff]
    %v596 = vld [vmem:[%s3 + $0x120] sm:$0xff]
    %v597 = vld [vmem:[%s3 + $0x128] sm:$0xff]
    %v598 = vld [vmem:[%s3 + $0x130] sm:$0xff]
    %v599 = vld [vmem:[%s3 + $0x138] sm:$0xff]
    %v600 = vld [vmem:[%s3 + $0x140] sm:$0xff]
    %v601 = vld [vmem:[%s3 + $0x148] sm:$0xff]
    %v602 = vld [vmem:[%s3 + $0x150] sm:$0xff]
    %v603 = vld [vmem:[%s3 + $0x158] sm:$0xff]
    %v604 = vld [vmem:[%s3 + $0x160] sm:$0xff]
    %v605 = vld [vmem:[%s3 + $0x168] sm:$0xff]
    %v606 = vld [vmem:[%s3 + $0x170] sm:$0xff]
    %v607 = vld [vmem:[%s3 + $0x178] sm:$0xff]
    %v608 = vld [vmem:[%s3 + $0x180] sm:$0xff]
    %v609 = vld [vmem:[%s3 + $0x188] sm:$0xff]
    %v610 = vld [vmem:[%s3 + $0x190] sm:$0xff]
    %v611 = vld [vmem:[%s3 + $0x198] sm:$0xff]
    %v612 = vld [vmem:[%s3 + $0x1a0] sm:$0xff]
    %v613 = vld [vmem:[%s3 + $0x1a8] sm:$0xff]
    %v614 = vld [vmem:[%s3 + $0x1b0] sm:$0xff]
    %v615 = vld [vmem:[%s3 + $0x1b8] sm:$0xff]
    %v616 = vld [vmem:[%s3 + $0x1c0] sm:$0xff]
    %v617 = vld [vmem:[%s3 + $0x1c8] sm:$0xff]
    %v618 = vld [vmem:[%s3 + $0x1d0] sm:$0xff]
    %v619 = vld [vmem:[%s3 + $0x1d8] sm:$0xff]
    %v620 = vld [vmem:[%s3 + $0x1e0] sm:$0xff]
    %v621 = vld [vmem:[%s3 + $0x1e8] sm:$0xff]
    %v622 = vld [vmem:[%s3 + $0x1f0] sm:$0xff]
    %v623 = vld [vmem:[%s3 + $0x1f8] sm:$0xff]
    %v624 = vld [vmem:[%s3 + $0x200] sm:$0xff]
    %v625 = vld [vmem:[%s3 + $0x208] sm:$0xff]
    %v626 = vld [vmem:[%s3 + $0x210] sm:$0xff]
    %v627 = vld [vmem:[%s3 + $0x218] sm:$0xff]
    %v628 = vld [vmem:[%s3 + $0x220] sm:$0xff]
    %v629 = vld [vmem:[%s3 + $0x228] sm:$0xff]
    %v630 = vld [vmem:[%s3 + $0x230] sm:$0xff]
    %v631 = vld [vmem:[%s3 + $0x238] sm:$0xff]
    %v632 = vld [vmem:[%s3 + $0x240] sm:$0xff]
    %v633 = vld [vmem:[%s3 + $0x248] sm:$0xff]
    %v634 = vld [vmem:[%s3 + $0x250] sm:$0xff]
    %v635 = vld [vmem:[%s3 + $0x258] sm:$0xff]
    %v636 = vld [vmem:[%s3 + $0x260] sm:$0xff]
    %v637 = vld [vmem:[%s3 + $0x268] sm:$0xff]
    %v638 = vld [vmem:[%s3 + $0x270] sm:$0xff]
    %v639 = vld [vmem:[%s3 + $0x278] sm:$0x7f]
    %v640 = vld [vmem:[%s4] sm:$0x1]
    %v642 = vlaneseq
    %v643 = vshrl.u32 %v642, 7
    %v644 = vsub.s32 0, %v643
    %v645 = vrot.slane %v640, %v644
    %v649 = vcombine.high %v558, %v558
    %v651 = vunpack.c.l.s4 1983009808
    %v652 = vunpack.c.0.s8 %v651
    %v653 = vlaneseq
    %v654 = vshrl.u32 %v653, 7
    %v655 = vsub.s32 %v652, %v654
    %v656 = vrot.slane %v558, %v655
    %v658 = vunpack.c.l.s4 1983009808
    %v659 = vunpack.c.0.s8 %v658
    %v660 = vlaneseq
    %v661 = vshrl.u32 %v660, 7
    %v662 = vsub.s32 %v659, %v661
    %v663 = vrot.slane %v649, %v662
    %v664 = vcombine.high %v656, %v656
    %v665 = vcombine.high %v663, %v663
    %v667 = vunpack.c.l.s4 1983009808
    %v668 = vunpack.c.0.s8 %v667
    %v669 = vlaneseq
    %v670 = vshrl.u32 %v669, 7
    %v671 = vsub.s32 %v668, %v670
    %v672 = vrot.slane %v559, %v671
    %v677 = vsel %vm55, %v672, 0
    %vm679 = vcmask 1046528
    %v681 = vsel %vm679, %v639, 0
    %683 = vmatprep.subr.mxu0 0.0
    %v684 = vand.u32 %v560, 4294901760
    %685 = vmatpush1.msra.mxu0 %v684
    %686 = vmatprep.subr.mxu0 0.0
    %v687 = vand.u32 %v561, 4294901760
    %688 = vmatpush1.msra.mxu0 %v687
    %689 = vmatprep.subr.mxu0 0.0
    %v690 = vand.u32 %v562, 4294901760
    %691 = vmatpush1.msra.mxu0 %v690
    %692 = vmatprep.subr.mxu0 0.0
    %v693 = vand.u32 %v563, 4294901760
    %694 = vmatpush1.msra.mxu0 %v693
    %695 = vmatprep.subr.mxu0 0.0
    %v696 = vand.u32 %v564, 4294901760
    %697 = vmatpush1.msra.mxu0 %v696
    %698 = vmatprep.subr.mxu0 0.0
    %v699 = vand.u32 %v565, 4294901760
    %700 = vmatpush1.msra.mxu0 %v699
    %701 = vmatprep.subr.mxu0 0.0
    %v702 = vand.u32 %v566, 4294901760
    %703 = vmatpush1.msra.mxu0 %v702
    %704 = vmatprep.subr.mxu0 0.0
    %v705 = vand.u32 %v567, 4294901760
    %706 = vmatpush1.msra.mxu0 %v705
    %707 = vmatprep.subr.mxu0 0.0
    %v708 = vand.u32 %v568, 4294901760
    %709 = vmatpush1.msra.mxu0 %v708
    %710 = vmatprep.subr.mxu0 0.0
    %v711 = vand.u32 %v569, 4294901760
    %712 = vmatpush1.msra.mxu0 %v711
    %713 = vmatprep.subr.mxu0 0.0
    %v714 = vand.u32 %v570, 4294901760
    %715 = vmatpush1.msra.mxu0 %v714
    %716 = vmatprep.subr.mxu0 0.0
    %v717 = vand.u32 %v571, 4294901760
    %718 = vmatpush1.msra.mxu0 %v717
    %719 = vmatprep.subr.mxu0 0.0
    %v720 = vand.u32 %v572, 4294901760
    %721 = vmatpush1.msra.mxu0 %v720
    %722 = vmatprep.subr.mxu0 0.0
    %v723 = vand.u32 %v573, 4294901760
    %724 = vmatpush1.msra.mxu0 %v723
    %725 = vmatprep.subr.mxu0 0.0
    %v726 = vand.u32 %v574, 4294901760
    %727 = vmatpush1.msra.mxu0 %v726
    %728 = vmatprep.subr.mxu0 0.0
    %v729 = vand.u32 %v575, 4294901760
    %730 = vmatpush1.msra.mxu0 %v729
    %731 = vmatprep.subr.mxu0 0.0
    %v732 = vand.u32 %v576, 4294901760
    %733 = vmatpush1.msra.mxu0 %v732
    %734 = vmatprep.subr.mxu0 0.0
    %v735 = vand.u32 %v577, 4294901760
    %736 = vmatpush1.msra.mxu0 %v735
    %737 = vmatprep.subr.mxu0 0.0
    %v738 = vand.u32 %v578, 4294901760
    %739 = vmatpush1.msra.mxu0 %v738
    %740 = vmatprep.subr.mxu0 0.0
    %v741 = vand.u32 %v579, 4294901760
    %742 = vmatpush1.msra.mxu0 %v741
    %743 = vmatprep.subr.mxu0 0.0
    %v744 = vand.u32 %v580, 4294901760
    %745 = vmatpush1.msra.mxu0 %v744
    %746 = vmatprep.subr.mxu0 0.0
    %v747 = vand.u32 %v581, 4294901760
    %748 = vmatpush1.msra.mxu0 %v747
    %749 = vmatprep.subr.mxu0 0.0
    %v750 = vand.u32 %v582, 4294901760
    %751 = vmatpush1.msra.mxu0 %v750
    %752 = vmatprep.subr.mxu0 0.0
    %v753 = vand.u32 %v583, 4294901760
    %754 = vmatpush1.msra.mxu0 %v753
    %755 = vmatprep.subr.mxu0 0.0
    %v756 = vand.u32 %v584, 4294901760
    %757 = vmatpush1.msra.mxu0 %v756
    %758 = vmatprep.subr.mxu0 0.0
    %v759 = vand.u32 %v585, 4294901760
    %760 = vmatpush1.msra.mxu0 %v759
    %761 = vmatprep.subr.mxu0 0.0
    %v762 = vand.u32 %v586, 4294901760
    %763 = vmatpush1.msra.mxu0 %v762
    %764 = vmatprep.subr.mxu0 0.0
    %v765 = vand.u32 %v587, 4294901760
    %766 = vmatpush1.msra.mxu0 %v765
    %767 = vmatprep.subr.mxu0 0.0
    %v768 = vand.u32 %v588, 4294901760
    %769 = vmatpush1.msra.mxu0 %v768
    %770 = vmatprep.subr.mxu0 0.0
    %v771 = vand.u32 %v589, 4294901760
    %772 = vmatpush1.msra.mxu0 %v771
    %773 = vmatprep.subr.mxu0 0.0
    %v774 = vand.u32 %v590, 4294901760
    %775 = vmatpush1.msra.mxu0 %v774
    %776 = vmatprep.subr.mxu0 0.0
    %v777 = vand.u32 %v591, 4294901760
    %778 = vmatpush1.msra.mxu0 %v777
    %v779 = vand.u32 %v664, 4294901760
    %v780 = vsub.f32 %v664, %v779
    %v781 = vand.u32 %v780, 4294901760
    %v782 = vsub.f32 %v780, %v781
    %v783 = vand.u32 %v782, 4294901760
    %784 = vmatprep.mubr.f32.mxu0 %v783
    %v785 = vand.u32 %v656, 4294901760
    %v786 = vsub.f32 %v656, %v785
    %v787 = vand.u32 %v786, 4294901760
    %v788 = vsub.f32 %v786, %v787
    %v789 = vand.u32 %v788, 4294901760
    %790 = vmatmul.mubr.f32.gmra.mrb[0].mxu0 %v789
    %v791 = vpop.f32.mrb[0].mxu0
    %v792 = vadd.f32 %v645, %v791
    %v793 = vpop.f32.mrb[0].mxu0
    %794 = vdwg.mxu0
    %795 = vmatprep.subr.mxu0 0.0
    %v796 = vand.u32 %v560, 4294901760
    %v797 = vsub.f32 %v560, %v796
    %v798 = vand.u32 %v797, 4294901760
    %v799 = vsub.f32 %v797, %v798
    %v800 = vand.u32 %v799, 4294901760
    %801 = vmatpush1.msra.mxu0 %v800
    %802 = vmatprep.subr.mxu0 0.0
    %v803 = vand.u32 %v561, 4294901760
    %v804 = vsub.f32 %v561, %v803
    %v805 = vand.u32 %v804, 4294901760
    %v806 = vsub.f32 %v804, %v805
    %v807 = vand.u32 %v806, 4294901760
    %808 = vmatpush1.msra.mxu0 %v807
    %809 = vmatprep.subr.mxu0 0.0
    %v810 = vand.u32 %v562, 4294901760
    %v811 = vsub.f32 %v562, %v810
    %v812 = vand.u32 %v811, 4294901760
    %v813 = vsub.f32 %v811, %v812
    %v814 = vand.u32 %v813, 4294901760
    %815 = vmatpush1.msra.mxu0 %v814
    %816 = vmatprep.subr.mxu0 0.0
    %v817 = vand.u32 %v563, 4294901760
    %v818 = vsub.f32 %v563, %v817
    %v819 = vand.u32 %v818, 4294901760
    %v820 = vsub.f32 %v818, %v819
    %v821 = vand.u32 %v820, 4294901760
    %822 = vmatpush1.msra.mxu0 %v821
    %823 = vmatprep.subr.mxu0 0.0
    %v824 = vand.u32 %v564, 4294901760
    %v825 = vsub.f32 %v564, %v824
    %v826 = vand.u32 %v825, 4294901760
    %v827 = vsub.f32 %v825, %v826
    %v828 = vand.u32 %v827, 4294901760
    %829 = vmatpush1.msra.mxu0 %v828
    %830 = vmatprep.subr.mxu0 0.0
    %v831 = vand.u32 %v565, 4294901760
    %v832 = vsub.f32 %v565, %v831
    %v833 = vand.u32 %v832, 4294901760
    %v834 = vsub.f32 %v832, %v833
    %v835 = vand.u32 %v834, 4294901760
    %836 = vmatpush1.msra.mxu0 %v835
    %837 = vmatprep.subr.mxu0 0.0
    %v838 = vand.u32 %v566, 4294901760
    %v839 = vsub.f32 %v566, %v838
    %v840 = vand.u32 %v839, 4294901760
    %v841 = vsub.f32 %v839, %v840
    %v842 = vand.u32 %v841, 4294901760
    %843 = vmatpush1.msra.mxu0 %v842
    %844 = vmatprep.subr.mxu0 0.0
    %v845 = vand.u32 %v567, 4294901760
    %v846 = vsub.f32 %v567, %v845
    %v847 = vand.u32 %v846, 4294901760
    %v848 = vsub.f32 %v846, %v847
    %v849 = vand.u32 %v848, 4294901760
    %850 = vmatpush1.msra.mxu0 %v849
    %851 = vmatprep.subr.mxu0 0.0
    %v852 = vand.u32 %v568, 4294901760
    %v853 = vsub.f32 %v568, %v852
    %v854 = vand.u32 %v853, 4294901760
    %v855 = vsub.f32 %v853, %v854
    %v856 = vand.u32 %v855, 4294901760
    %857 = vmatpush1.msra.mxu0 %v856
    %858 = vmatprep.subr.mxu0 0.0
    %v859 = vand.u32 %v569, 4294901760
    %v860 = vsub.f32 %v569, %v859
    %v861 = vand.u32 %v860, 4294901760
    %v862 = vsub.f32 %v860, %v861
    %v863 = vand.u32 %v862, 4294901760
    %864 = vmatpush1.msra.mxu0 %v863
    %865 = vmatprep.subr.mxu0 0.0
    %v866 = vand.u32 %v570, 4294901760
    %v867 = vsub.f32 %v570, %v866
    %v868 = vand.u32 %v867, 4294901760
    %v869 = vsub.f32 %v867, %v868
    %v870 = vand.u32 %v869, 4294901760
    %871 = vmatpush1.msra.mxu0 %v870
    %872 = vmatprep.subr.mxu0 0.0
    %v873 = vand.u32 %v571, 4294901760
    %v874 = vsub.f32 %v571, %v873
    %v875 = vand.u32 %v874, 4294901760
    %v876 = vsub.f32 %v874, %v875
    %v877 = vand.u32 %v876, 4294901760
    %878 = vmatpush1.msra.mxu0 %v877
    %879 = vmatprep.subr.mxu0 0.0
    %v880 = vand.u32 %v572, 4294901760
    %v881 = vsub.f32 %v572, %v880
    %v882 = vand.u32 %v881, 4294901760
    %v883 = vsub.f32 %v881, %v882
    %v884 = vand.u32 %v883, 4294901760
    %885 = vmatpush1.msra.mxu0 %v884
    %886 = vmatprep.subr.mxu0 0.0
    %v887 = vand.u32 %v573, 4294901760
    %v888 = vsub.f32 %v573, %v887
    %v889 = vand.u32 %v888, 4294901760
    %v890 = vsub.f32 %v888, %v889
    %v891 = vand.u32 %v890, 4294901760
    %892 = vmatpush1.msra.mxu0 %v891
    %893 = vmatprep.subr.mxu0 0.0
    %v894 = vand.u32 %v574, 4294901760
    %v895 = vsub.f32 %v574, %v894
    %v896 = vand.u32 %v895, 4294901760
    %v897 = vsub.f32 %v895, %v896
    %v898 = vand.u32 %v897, 4294901760
    %899 = vmatpush1.msra.mxu0 %v898
    %900 = vmatprep.subr.mxu0 0.0
    %v901 = vand.u32 %v575, 4294901760
    %v902 = vsub.f32 %v575, %v901
    %v903 = vand.u32 %v902, 4294901760
    %v904 = vsub.f32 %v902, %v903
    %v905 = vand.u32 %v904, 4294901760
    %906 = vmatpush1.msra.mxu0 %v905
    %907 = vmatprep.subr.mxu0 0.0
    %v908 = vand.u32 %v576, 4294901760
    %v909 = vsub.f32 %v576, %v908
    %v910 = vand.u32 %v909, 4294901760
    %v911 = vsub.f32 %v909, %v910
    %v912 = vand.u32 %v911, 4294901760
    %913 = vmatpush1.msra.mxu0 %v912
    %914 = vmatprep.subr.mxu0 0.0
    %v915 = vand.u32 %v577, 4294901760
    %v916 = vsub.f32 %v577, %v915
    %v917 = vand.u32 %v916, 4294901760
    %v918 = vsub.f32 %v916, %v917
    %v919 = vand.u32 %v918, 4294901760
    %920 = vmatpush1.msra.mxu0 %v919
    %921 = vmatprep.subr.mxu0 0.0
    %v922 = vand.u32 %v578, 4294901760
    %v923 = vsub.f32 %v578, %v922
    %v924 = vand.u32 %v923, 4294901760
    %v925 = vsub.f32 %v923, %v924
    %v926 = vand.u32 %v925, 4294901760
    %927 = vmatpush1.msra.mxu0 %v926
    %928 = vmatprep.subr.mxu0 0.0
    %v929 = vand.u32 %v579, 4294901760
    %v930 = vsub.f32 %v579, %v929
    %v931 = vand.u32 %v930, 4294901760
    %v932 = vsub.f32 %v930, %v931
    %v933 = vand.u32 %v932, 4294901760
    %934 = vmatpush1.msra.mxu0 %v933
    %935 = vmatprep.subr.mxu0 0.0
    %v936 = vand.u32 %v580, 4294901760
    %v937 = vsub.f32 %v580, %v936
    %v938 = vand.u32 %v937, 4294901760
    %v939 = vsub.f32 %v937, %v938
    %v940 = vand.u32 %v939, 4294901760
    %941 = vmatpush1.msra.mxu0 %v940
    %942 = vmatprep.subr.mxu0 0.0
    %v943 = vand.u32 %v581, 4294901760
    %v944 = vsub.f32 %v581, %v943
    %v945 = vand.u32 %v944, 4294901760
    %v946 = vsub.f32 %v944, %v945
    %v947 = vand.u32 %v946, 4294901760
    %948 = vmatpush1.msra.mxu0 %v947
    %949 = vmatprep.subr.mxu0 0.0
    %v950 = vand.u32 %v582, 4294901760
    %v951 = vsub.f32 %v582, %v950
    %v952 = vand.u32 %v951, 4294901760
    %v953 = vsub.f32 %v951, %v952
    %v954 = vand.u32 %v953, 4294901760
    %955 = vmatpush1.msra.mxu0 %v954
    %956 = vmatprep.subr.mxu0 0.0
    %v957 = vand.u32 %v583, 4294901760
    %v958 = vsub.f32 %v583, %v957
    %v959 = vand.u32 %v958, 4294901760
    %v960 = vsub.f32 %v958, %v959
    %v961 = vand.u32 %v960, 4294901760
    %962 = vmatpush1.msra.mxu0 %v961
    %963 = vmatprep.subr.mxu0 0.0
    %v964 = vand.u32 %v584, 4294901760
    %v965 = vsub.f32 %v584, %v964
    %v966 = vand.u32 %v965, 4294901760
    %v967 = vsub.f32 %v965, %v966
    %v968 = vand.u32 %v967, 4294901760
    %969 = vmatpush1.msra.mxu0 %v968
    %970 = vmatprep.subr.mxu0 0.0
    %v971 = vand.u32 %v585, 4294901760
    %v972 = vsub.f32 %v585, %v971
    %v973 = vand.u32 %v972, 4294901760
    %v974 = vsub.f32 %v972, %v973
    %v975 = vand.u32 %v974, 4294901760
    %976 = vmatpush1.msra.mxu0 %v975
    %977 = vmatprep.subr.mxu0 0.0
    %v978 = vand.u32 %v586, 4294901760
    %v979 = vsub.f32 %v586, %v978
    %v980 = vand.u32 %v979, 4294901760
    %v981 = vsub.f32 %v979, %v980
    %v982 = vand.u32 %v981, 4294901760
    %983 = vmatpush1.msra.mxu0 %v982
    %984 = vmatprep.subr.mxu0 0.0
    %v985 = vand.u32 %v587, 4294901760
    %v986 = vsub.f32 %v587, %v985
    %v987 = vand.u32 %v986, 4294901760
    %v988 = vsub.f32 %v986, %v987
    %v989 = vand.u32 %v988, 4294901760
    %990 = vmatpush1.msra.mxu0 %v989
    %991 = vmatprep.subr.mxu0 0.0
    %v992 = vand.u32 %v588, 4294901760
    %v993 = vsub.f32 %v588, %v992
    %v994 = vand.u32 %v993, 4294901760
    %v995 = vsub.f32 %v993, %v994
    %v996 = vand.u32 %v995, 4294901760
    %997 = vmatpush1.msra.mxu0 %v996
    %998 = vmatprep.subr.mxu0 0.0
    %v999 = vand.u32 %v589, 4294901760
    %v1000 = vsub.f32 %v589, %v999
    %v1001 = vand.u32 %v1000, 4294901760
    %v1002 = vsub.f32 %v1000, %v1001
    %v1003 = vand.u32 %v1002, 4294901760
    %1004 = vmatpush1.msra.mxu0 %v1003
    %1005 = vmatprep.subr.mxu0 0.0
    %v1006 = vand.u32 %v590, 4294901760
    %v1007 = vsub.f32 %v590, %v1006
    %v1008 = vand.u32 %v1007, 4294901760
    %v1009 = vsub.f32 %v1007, %v1008
    %v1010 = vand.u32 %v1009, 4294901760
    %1011 = vmatpush1.msra.mxu0 %v1010
    %1012 = vmatprep.subr.mxu0 0.0
    %v1013 = vand.u32 %v591, 4294901760
    %v1014 = vsub.f32 %v591, %v1013
    %v1015 = vand.u32 %v1014, 4294901760
    %v1016 = vsub.f32 %v1014, %v1015
    %v1017 = vand.u32 %v1016, 4294901760
    %1018 = vmatpush1.msra.mxu0 %v1017
    %v1019 = vand.u32 %v664, 4294901760
    %1020 = vmatprep.mubr.f32.mxu0 %v1019
    %v1021 = vand.u32 %v656, 4294901760
    %1022 = vmatmul.mubr.f32.gmra.mrb[0].mxu0 %v1021
    %v1023 = vpop.f32.mrb[0].mxu0
    %v1024 = vadd.f32 %v792, %v1023
    %v1025 = vpop.f32.mrb[0].mxu0
    %1026 = vdwg.mxu0
    %1027 = vmatprep.subr.mxu0 0.0
    %v1028 = vand.u32 %v560, 4294901760
    %v1029 = vsub.f32 %v560, %v1028
    %1030 = vmatpush1.msra.mxu0 %v1029
    %1031 = vmatprep.subr.mxu0 0.0
    %v1032 = vand.u32 %v561, 4294901760
    %v1033 = vsub.f32 %v561, %v1032
    %1034 = vmatpush1.msra.mxu0 %v1033
    %1035 = vmatprep.subr.mxu0 0.0
    %v1036 = vand.u32 %v562, 4294901760
    %v1037 = vsub.f32 %v562, %v1036
    %1038 = vmatpush1.msra.mxu0 %v1037
    %1039 = vmatprep.subr.mxu0 0.0
    %v1040 = vand.u32 %v563, 4294901760
    %v1041 = vsub.f32 %v563, %v1040
    %1042 = vmatpush1.msra.mxu0 %v1041
    %1043 = vmatprep.subr.mxu0 0.0
    %v1044 = vand.u32 %v564, 4294901760
    %v1045 = vsub.f32 %v564, %v1044
    %1046 = vmatpush1.msra.mxu0 %v1045
    %1047 = vmatprep.subr.mxu0 0.0
    %v1048 = vand.u32 %v565, 4294901760
    %v1049 = vsub.f32 %v565, %v1048
    %1050 = vmatpush1.msra.mxu0 %v1049
    %1051 = vmatprep.subr.mxu0 0.0
    %v1052 = vand.u32 %v566, 4294901760
    %v1053 = vsub.f32 %v566, %v1052
    %1054 = vmatpush1.msra.mxu0 %v1053
    %1055 = vmatprep.subr.mxu0 0.0
    %v1056 = vand.u32 %v567, 4294901760
    %v1057 = vsub.f32 %v567, %v1056
    %1058 = vmatpush1.msra.mxu0 %v1057
    %1059 = vmatprep.subr.mxu0 0.0
    %v1060 = vand.u32 %v568, 4294901760
    %v1061 = vsub.f32 %v568, %v1060
    %1062 = vmatpush1.msra.mxu0 %v1061
    %1063 = vmatprep.subr.mxu0 0.0
    %v1064 = vand.u32 %v569, 4294901760
    %v1065 = vsub.f32 %v569, %v1064
    %1066 = vmatpush1.msra.mxu0 %v1065
    %1067 = vmatprep.subr.mxu0 0.0
    %v1068 = vand.u32 %v570, 4294901760
    %v1069 = vsub.f32 %v570, %v1068
    %1070 = vmatpush1.msra.mxu0 %v1069
    %1071 = vmatprep.subr.mxu0 0.0
    %v1072 = vand.u32 %v571, 4294901760
    %v1073 = vsub.f32 %v571, %v1072
    %1074 = vmatpush1.msra.mxu0 %v1073
    %1075 = vmatprep.subr.mxu0 0.0
    %v1076 = vand.u32 %v572, 4294901760
    %v1077 = vsub.f32 %v572, %v1076
    %1078 = vmatpush1.msra.mxu0 %v1077
    %1079 = vmatprep.subr.mxu0 0.0
    %v1080 = vand.u32 %v573, 4294901760
    %v1081 = vsub.f32 %v573, %v1080
    %1082 = vmatpush1.msra.mxu0 %v1081
    %1083 = vmatprep.subr.mxu0 0.0
    %v1084 = vand.u32 %v574, 4294901760
    %v1085 = vsub.f32 %v574, %v1084
    %1086 = vmatpush1.msra.mxu0 %v1085
    %1087 = vmatprep.subr.mxu0 0.0
    %v1088 = vand.u32 %v575, 4294901760
    %v1089 = vsub.f32 %v575, %v1088
    %1090 = vmatpush1.msra.mxu0 %v1089
    %1091 = vmatprep.subr.mxu0 0.0
    %v1092 = vand.u32 %v576, 4294901760
    %v1093 = vsub.f32 %v576, %v1092
    %1094 = vmatpush1.msra.mxu0 %v1093
    %1095 = vmatprep.subr.mxu0 0.0
    %v1096 = vand.u32 %v577, 4294901760
    %v1097 = vsub.f32 %v577, %v1096
    %1098 = vmatpush1.msra.mxu0 %v1097
    %1099 = vmatprep.subr.mxu0 0.0
    %v1100 = vand.u32 %v578, 4294901760
    %v1101 = vsub.f32 %v578, %v1100
    %1102 = vmatpush1.msra.mxu0 %v1101
    %1103 = vmatprep.subr.mxu0 0.0
    %v1104 = vand.u32 %v579, 4294901760
    %v1105 = vsub.f32 %v579, %v1104
    %1106 = vmatpush1.msra.mxu0 %v1105
    %1107 = vmatprep.subr.mxu0 0.0
    %v1108 = vand.u32 %v580, 4294901760
    %v1109 = vsub.f32 %v580, %v1108
    %1110 = vmatpush1.msra.mxu0 %v1109
    %1111 = vmatprep.subr.mxu0 0.0
    %v1112 = vand.u32 %v581, 4294901760
    %v1113 = vsub.f32 %v581, %v1112
    %1114 = vmatpush1.msra.mxu0 %v1113
    %1115 = vmatprep.subr.mxu0 0.0
    %v1116 = vand.u32 %v582, 4294901760
    %v1117 = vsub.f32 %v582, %v1116
    %1118 = vmatpush1.msra.mxu0 %v1117
    %1119 = vmatprep.subr.mxu0 0.0
    %v1120 = vand.u32 %v583, 4294901760
    %v1121 = vsub.f32 %v583, %v1120
    %1122 = vmatpush1.msra.mxu0 %v1121
    %1123 = vmatprep.subr.mxu0 0.0
    %v1124 = vand.u32 %v584, 4294901760
    %v1125 = vsub.f32 %v584, %v1124
    %1126 = vmatpush1.msra.mxu0 %v1125
    %1127 = vmatprep.subr.mxu0 0.0
    %v1128 = vand.u32 %v585, 4294901760
    %v1129 = vsub.f32 %v585, %v1128
    %1130 = vmatpush1.msra.mxu0 %v1129
    %1131 = vmatprep.subr.mxu0 0.0
    %v1132 = vand.u32 %v586, 4294901760
    %v1133 = vsub.f32 %v586, %v1132
    %1134 = vmatpush1.msra.mxu0 %v1133
    %1135 = vmatprep.subr.mxu0 0.0
    %v1136 = vand.u32 %v587, 4294901760
    %v1137 = vsub.f32 %v587, %v1136
    %1138 = vmatpush1.msra.mxu0 %v1137
    %1139 = vmatprep.subr.mxu0 0.0
    %v1140 = vand.u32 %v588, 4294901760
    %v1141 = vsub.f32 %v588, %v1140
    %1142 = vmatpush1.msra.mxu0 %v1141
    %1143 = vmatprep.subr.mxu0 0.0
    %v1144 = vand.u32 %v589, 4294901760
    %v1145 = vsub.f32 %v589, %v1144
    %1146 = vmatpush1.msra.mxu0 %v1145
    %1147 = vmatprep.subr.mxu0 0.0
    %v1148 = vand.u32 %v590, 4294901760
    %v1149 = vsub.f32 %v590, %v1148
    %1150 = vmatpush1.msra.mxu0 %v1149
    %1151 = vmatprep.subr.mxu0 0.0
    %v1152 = vand.u32 %v591, 4294901760
    %v1153 = vsub.f32 %v591, %v1152
    %1154 = vmatpush1.msra.mxu0 %v1153
    %v1155 = vand.u32 %v664, 4294901760
    %v1156 = vsub.f32 %v664, %v1155
    %1157 = vmatprep.mubr.f32.mxu0 %v1156
    %v1158 = vand.u32 %v656, 4294901760
    %v1159 = vsub.f32 %v656, %v1158
    %1160 = vmatmul.mubr.f32.gmra.mrb[0].mxu0 %v1159
    %v1161 = vpop.f32.mrb[0].mxu0
    %v1162 = vadd.f32 %v1024, %v1161
    %v1163 = vpop.f32.mrb[0].mxu0
    %1164 = vdwg.mxu0
    %1165 = vmatprep.subr.mxu0 0.0
    %v1166 = vand.u32 %v560, 4294901760
    %1167 = vmatpush1.msra.mxu0 %v1166
    %1168 = vmatprep.subr.mxu0 0.0
    %v1169 = vand.u32 %v561, 4294901760
    %1170 = vmatpush1.msra.mxu0 %v1169
    %1171 = vmatprep.subr.mxu0 0.0
    %v1172 = vand.u32 %v562, 4294901760
    %1173 = vmatpush1.msra.mxu0 %v1172
    %1174 = vmatprep.subr.mxu0 0.0
    %v1175 = vand.u32 %v563, 4294901760
    %1176 = vmatpush1.msra.mxu0 %v1175
    %1177 = vmatprep.subr.mxu0 0.0
    %v1178 = vand.u32 %v564, 4294901760
    %1179 = vmatpush1.msra.mxu0 %v1178
    %1180 = vmatprep.subr.mxu0 0.0
    %v1181 = vand.u32 %v565, 4294901760
    %1182 = vmatpush1.msra.mxu0 %v1181
    %1183 = vmatprep.subr.mxu0 0.0
    %v1184 = vand.u32 %v566, 4294901760
    %1185 = vmatpush1.msra.mxu0 %v1184
    %1186 = vmatprep.subr.mxu0 0.0
    %v1187 = vand.u32 %v567, 4294901760
    %1188 = vmatpush1.msra.mxu0 %v1187
    %1189 = vmatprep.subr.mxu0 0.0
    %v1190 = vand.u32 %v568, 4294901760
    %1191 = vmatpush1.msra.mxu0 %v1190
    %1192 = vmatprep.subr.mxu0 0.0
    %v1193 = vand.u32 %v569, 4294901760
    %1194 = vmatpush1.msra.mxu0 %v1193
    %1195 = vmatprep.subr.mxu0 0.0
    %v1196 = vand.u32 %v570, 4294901760
    %1197 = vmatpush1.msra.mxu0 %v1196
    %1198 = vmatprep.subr.mxu0 0.0
    %v1199 = vand.u32 %v571, 4294901760
    %1200 = vmatpush1.msra.mxu0 %v1199
    %1201 = vmatprep.subr.mxu0 0.0
    %v1202 = vand.u32 %v572, 4294901760
    %1203 = vmatpush1.msra.mxu0 %v1202
    %1204 = vmatprep.subr.mxu0 0.0
    %v1205 = vand.u32 %v573, 4294901760
    %1206 = vmatpush1.msra.mxu0 %v1205
    %1207 = vmatprep.subr.mxu0 0.0
    %v1208 = vand.u32 %v574, 4294901760
    %1209 = vmatpush1.msra.mxu0 %v1208
    %1210 = vmatprep.subr.mxu0 0.0
    %v1211 = vand.u32 %v575, 4294901760
    %1212 = vmatpush1.msra.mxu0 %v1211
    %1213 = vmatprep.subr.mxu0 0.0
    %v1214 = vand.u32 %v576, 4294901760
    %1215 = vmatpush1.msra.mxu0 %v1214
    %1216 = vmatprep.subr.mxu0 0.0
    %v1217 = vand.u32 %v577, 4294901760
    %1218 = vmatpush1.msra.mxu0 %v1217
    %1219 = vmatprep.subr.mxu0 0.0
    %v1220 = vand.u32 %v578, 4294901760
    %1221 = vmatpush1.msra.mxu0 %v1220
    %1222 = vmatprep.subr.mxu0 0.0
    %v1223 = vand.u32 %v579, 4294901760
    %1224 = vmatpush1.msra.mxu0 %v1223
    %1225 = vmatprep.subr.mxu0 0.0
    %v1226 = vand.u32 %v580, 4294901760
    %1227 = vmatpush1.msra.mxu0 %v1226
    %1228 = vmatprep.subr.mxu0 0.0
    %v1229 = vand.u32 %v581, 4294901760
    %1230 = vmatpush1.msra.mxu0 %v1229
    %1231 = vmatprep.subr.mxu0 0.0
    %v1232 = vand.u32 %v582, 4294901760
    %1233 = vmatpush1.msra.mxu0 %v1232
    %1234 = vmatprep.subr.mxu0 0.0
    %v1235 = vand.u32 %v583, 4294901760
    %1236 = vmatpush1.msra.mxu0 %v1235
    %1237 = vmatprep.subr.mxu0 0.0
    %v1238 = vand.u32 %v584, 4294901760
    %1239 = vmatpush1.msra.mxu0 %v1238
    %1240 = vmatprep.subr.mxu0 0.0
    %v1241 = vand.u32 %v585, 4294901760
    %1242 = vmatpush1.msra.mxu0 %v1241
    %1243 = vmatprep.subr.mxu0 0.0
    %v1244 = vand.u32 %v586, 4294901760
    %1245 = vmatpush1.msra.mxu0 %v1244
    %1246 = vmatprep.subr.mxu0 0.0
    %v1247 = vand.u32 %v587, 4294901760
    %1248 = vmatpush1.msra.mxu0 %v1247
    %1249 = vmatprep.subr.mxu0 0.0
    %v1250 = vand.u32 %v588, 4294901760
    %1251 = vmatpush1.msra.mxu0 %v1250
    %1252 = vmatprep.subr.mxu0 0.0
    %v1253 = vand.u32 %v589, 4294901760
    %1254 = vmatpush1.msra.mxu0 %v1253
    %1255 = vmatprep.subr.mxu0 0.0
    %v1256 = vand.u32 %v590, 4294901760
    %1257 = vmatpush1.msra.mxu0 %v1256
    %1258 = vmatprep.subr.mxu0 0.0
    %v1259 = vand.u32 %v591, 4294901760
    %1260 = vmatpush1.msra.mxu0 %v1259
    %v1261 = vand.u32 %v664, 4294901760
    %v1262 = vsub.f32 %v664, %v1261
    %v1263 = vand.u32 %v1262, 4294901760
    %1264 = vmatprep.mubr.f32.mxu0 %v1263
    %v1265 = vand.u32 %v656, 4294901760
    %v1266 = vsub.f32 %v656, %v1265
    %v1267 = vand.u32 %v1266, 4294901760
    %1268 = vmatmul.mubr.f32.gmra.mrb[0].mxu0 %v1267
    %v1269 = vpop.f32.mrb[0].mxu0
    %v1270 = vadd.f32 %v1162, %v1269
    %v1271 = vpop.f32.mrb[0].mxu0
    %1272 = vdwg.mxu0
    %1273 = vmatprep.subr.mxu0 0.0
    %v1274 = vand.u32 %v560, 4294901760
    %v1275 = vsub.f32 %v560, %v1274
    %v1276 = vand.u32 %v1275, 4294901760
    %1277 = vmatpush1.msra.mxu0 %v1276
    %1278 = vmatprep.subr.mxu0 0.0
    %v1279 = vand.u32 %v561, 4294901760
    %v1280 = vsub.f32 %v561, %v1279
    %v1281 = vand.u32 %v1280, 4294901760
    %1282 = vmatpush1.msra.mxu0 %v1281
    %1283 = vmatprep.subr.mxu0 0.0
    %v1284 = vand.u32 %v562, 4294901760
    %v1285 = vsub.f32 %v562, %v1284
    %v1286 = vand.u32 %v1285, 4294901760
    %1287 = vmatpush1.msra.mxu0 %v1286
    %1288 = vmatprep.subr.mxu0 0.0
    %v1289 = vand.u32 %v563, 4294901760
    %v1290 = vsub.f32 %v563, %v1289
    %v1291 = vand.u32 %v1290, 4294901760
    %1292 = vmatpush1.msra.mxu0 %v1291
    %1293 = vmatprep.subr.mxu0 0.0
    %v1294 = vand.u32 %v564, 4294901760
    %v1295 = vsub.f32 %v564, %v1294
    %v1296 = vand.u32 %v1295, 4294901760
    %1297 = vmatpush1.msra.mxu0 %v1296
    %1298 = vmatprep.subr.mxu0 0.0
    %v1299 = vand.u32 %v565, 4294901760
    %v1300 = vsub.f32 %v565, %v1299
    %v1301 = vand.u32 %v1300, 4294901760
    %1302 = vmatpush1.msra.mxu0 %v1301
    %1303 = vmatprep.subr.mxu0 0.0
    %v1304 = vand.u32 %v566, 4294901760
    %v1305 = vsub.f32 %v566, %v1304
    %v1306 = vand.u32 %v1305, 4294901760
    %1307 = vmatpush1.msra.mxu0 %v1306
    %1308 = vmatprep.subr.mxu0 0.0
    %v1309 = vand.u32 %v567, 4294901760
    %v1310 = vsub.f32 %v567, %v1309
    %v1311 = vand.u32 %v1310, 4294901760
    %1312 = vmatpush1.msra.mxu0 %v1311
    %1313 = vmatprep.subr.mxu0 0.0
    %v1314 = vand.u32 %v568, 4294901760
    %v1315 = vsub.f32 %v568, %v1314
    %v1316 = vand.u32 %v1315, 4294901760
    %1317 = vmatpush1.msra.mxu0 %v1316
    %1318 = vmatprep.subr.mxu0 0.0
    %v1319 = vand.u32 %v569, 4294901760
    %v1320 = vsub.f32 %v569, %v1319
    %v1321 = vand.u32 %v1320, 4294901760
    %1322 = vmatpush1.msra.mxu0 %v1321
    %1323 = vmatprep.subr.mxu0 0.0
    %v1324 = vand.u32 %v570, 4294901760
    %v1325 = vsub.f32 %v570, %v1324
    %v1326 = vand.u32 %v1325, 4294901760
    %1327 = vmatpush1.msra.mxu0 %v1326
    %1328 = vmatprep.subr.mxu0 0.0
    %v1329 = vand.u32 %v571, 4294901760
    %v1330 = vsub.f32 %v571, %v1329
    %v1331 = vand.u32 %v1330, 4294901760
    %1332 = vmatpush1.msra.mxu0 %v1331
    %1333 = vmatprep.subr.mxu0 0.0
    %v1334 = vand.u32 %v572, 4294901760
    %v1335 = vsub.f32 %v572, %v1334
    %v1336 = vand.u32 %v1335, 4294901760
    %1337 = vmatpush1.msra.mxu0 %v1336
    %1338 = vmatprep.subr.mxu0 0.0
    %v1339 = vand.u32 %v573, 4294901760
    %v1340 = vsub.f32 %v573, %v1339
    %v1341 = vand.u32 %v1340, 4294901760
    %1342 = vmatpush1.msra.mxu0 %v1341
    %1343 = vmatprep.subr.mxu0 0.0
    %v1344 = vand.u32 %v574, 4294901760
    %v1345 = vsub.f32 %v574, %v1344
    %v1346 = vand.u32 %v1345, 4294901760
    %1347 = vmatpush1.msra.mxu0 %v1346
    %1348 = vmatprep.subr.mxu0 0.0
    %v1349 = vand.u32 %v575, 4294901760
    %v1350 = vsub.f32 %v575, %v1349
    %v1351 = vand.u32 %v1350, 4294901760
    %1352 = vmatpush1.msra.mxu0 %v1351
    %1353 = vmatprep.subr.mxu0 0.0
    %v1354 = vand.u32 %v576, 4294901760
    %v1355 = vsub.f32 %v576, %v1354
    %v1356 = vand.u32 %v1355, 4294901760
    %1357 = vmatpush1.msra.mxu0 %v1356
    %1358 = vmatprep.subr.mxu0 0.0
    %v1359 = vand.u32 %v577, 4294901760
    %v1360 = vsub.f32 %v577, %v1359
    %v1361 = vand.u32 %v1360, 4294901760
    %1362 = vmatpush1.msra.mxu0 %v1361
    %1363 = vmatprep.subr.mxu0 0.0
    %v1364 = vand.u32 %v578, 4294901760
    %v1365 = vsub.f32 %v578, %v1364
    %v1366 = vand.u32 %v1365, 4294901760
    %1367 = vmatpush1.msra.mxu0 %v1366
    %1368 = vmatprep.subr.mxu0 0.0
    %v1369 = vand.u32 %v579, 4294901760
    %v1370 = vsub.f32 %v579, %v1369
    %v1371 = vand.u32 %v1370, 4294901760
    %1372 = vmatpush1.msra.mxu0 %v1371
    %1373 = vmatprep.subr.mxu0 0.0
    %v1374 = vand.u32 %v580, 4294901760
    %v1375 = vsub.f32 %v580, %v1374
    %v1376 = vand.u32 %v1375, 4294901760
    %1377 = vmatpush1.msra.mxu0 %v1376
    %1378 = vmatprep.subr.mxu0 0.0
    %v1379 = vand.u32 %v581, 4294901760
    %v1380 = vsub.f32 %v581, %v1379
    %v1381 = vand.u32 %v1380, 4294901760
    %1382 = vmatpush1.msra.mxu0 %v1381
    %1383 = vmatprep.subr.mxu0 0.0
    %v1384 = vand.u32 %v582, 4294901760
    %v1385 = vsub.f32 %v582, %v1384
    %v1386 = vand.u32 %v1385, 4294901760
    %1387 = vmatpush1.msra.mxu0 %v1386
    %1388 = vmatprep.subr.mxu0 0.0
    %v1389 = vand.u32 %v583, 4294901760
    %v1390 = vsub.f32 %v583, %v1389
    %v1391 = vand.u32 %v1390, 4294901760
    %1392 = vmatpush1.msra.mxu0 %v1391
    %1393 = vmatprep.subr.mxu0 0.0
    %v1394 = vand.u32 %v584, 4294901760
    %v1395 = vsub.f32 %v584, %v1394
    %v1396 = vand.u32 %v1395, 4294901760
    %1397 = vmatpush1.msra.mxu0 %v1396
    %1398 = vmatprep.subr.mxu0 0.0
    %v1399 = vand.u32 %v585, 4294901760
    %v1400 = vsub.f32 %v585, %v1399
    %v1401 = vand.u32 %v1400, 4294901760
    %1402 = vmatpush1.msra.mxu0 %v1401
    %1403 = vmatprep.subr.mxu0 0.0
    %v1404 = vand.u32 %v586, 4294901760
    %v1405 = vsub.f32 %v586, %v1404
    %v1406 = vand.u32 %v1405, 4294901760
    %1407 = vmatpush1.msra.mxu0 %v1406
    %1408 = vmatprep.subr.mxu0 0.0
    %v1409 = vand.u32 %v587, 4294901760
    %v1410 = vsub.f32 %v587, %v1409
    %v1411 = vand.u32 %v1410, 4294901760
    %1412 = vmatpush1.msra.mxu0 %v1411
    %1413 = vmatprep.subr.mxu0 0.0
    %v1414 = vand.u32 %v588, 4294901760
    %v1415 = vsub.f32 %v588, %v1414
    %v1416 = vand.u32 %v1415, 4294901760
    %1417 = vmatpush1.msra.mxu0 %v1416
    %1418 = vmatprep.subr.mxu0 0.0
    %v1419 = vand.u32 %v589, 4294901760
    %v1420 = vsub.f32 %v589, %v1419
    %v1421 = vand.u32 %v1420, 4294901760
    %1422 = vmatpush1.msra.mxu0 %v1421
    %1423 = vmatprep.subr.mxu0 0.0
    %v1424 = vand.u32 %v590, 4294901760
    %v1425 = vsub.f32 %v590, %v1424
    %v1426 = vand.u32 %v1425, 4294901760
    %1427 = vmatpush1.msra.mxu0 %v1426
    %1428 = vmatprep.subr.mxu0 0.0
    %v1429 = vand.u32 %v591, 4294901760
    %v1430 = vsub.f32 %v591, %v1429
    %v1431 = vand.u32 %v1430, 4294901760
    %1432 = vmatpush1.msra.mxu0 %v1431
    %v1433 = vand.u32 %v664, 4294901760
    %1434 = vmatprep.mubr.f32.mxu0 %v1433
    %v1435 = vand.u32 %v656, 4294901760
    %1436 = vmatmul.mubr.f32.gmra.mrb[0].mxu0 %v1435
    %v1437 = vpop.f32.mrb[0].mxu0
    %v1438 = vadd.f32 %v1270, %v1437
    %v1439 = vpop.f32.mrb[0].mxu0
    %1440 = vdwg.mxu0
    %1441 = vmatprep.subr.mxu0 0.0
    %v1442 = vand.u32 %v560, 4294901760
    %1443 = vmatpush1.msra.mxu0 %v1442
    %1444 = vmatprep.subr.mxu0 0.0
    %v1445 = vand.u32 %v561, 4294901760
    %1446 = vmatpush1.msra.mxu0 %v1445
    %1447 = vmatprep.subr.mxu0 0.0
    %v1448 = vand.u32 %v562, 4294901760
    %1449 = vmatpush1.msra.mxu0 %v1448
    %1450 = vmatprep.subr.mxu0 0.0
    %v1451 = vand.u32 %v563, 4294901760
    %1452 = vmatpush1.msra.mxu0 %v1451
    %1453 = vmatprep.subr.mxu0 0.0
    %v1454 = vand.u32 %v564, 4294901760
    %1455 = vmatpush1.msra.mxu0 %v1454
    %1456 = vmatprep.subr.mxu0 0.0
    %v1457 = vand.u32 %v565, 4294901760
    %1458 = vmatpush1.msra.mxu0 %v1457
    %1459 = vmatprep.subr.mxu0 0.0
    %v1460 = vand.u32 %v566, 4294901760
    %1461 = vmatpush1.msra.mxu0 %v1460
    %1462 = vmatprep.subr.mxu0 0.0
    %v1463 = vand.u32 %v567, 4294901760
    %1464 = vmatpush1.msra.mxu0 %v1463
    %1465 = vmatprep.subr.mxu0 0.0
    %v1466 = vand.u32 %v568, 4294901760
    %1467 = vmatpush1.msra.mxu0 %v1466
    %1468 = vmatprep.subr.mxu0 0.0
    %v1469 = vand.u32 %v569, 4294901760
    %1470 = vmatpush1.msra.mxu0 %v1469
    %1471 = vmatprep.subr.mxu0 0.0
    %v1472 = vand.u32 %v570, 4294901760
    %1473 = vmatpush1.msra.mxu0 %v1472
    %1474 = vmatprep.subr.mxu0 0.0
    %v1475 = vand.u32 %v571, 4294901760
    %1476 = vmatpush1.msra.mxu0 %v1475
    %1477 = vmatprep.subr.mxu0 0.0
    %v1478 = vand.u32 %v572, 4294901760
    %1479 = vmatpush1.msra.mxu0 %v1478
    %1480 = vmatprep.subr.mxu0 0.0
    %v1481 = vand.u32 %v573, 4294901760
    %1482 = vmatpush1.msra.mxu0 %v1481
    %1483 = vmatprep.subr.mxu0 0.0
    %v1484 = vand.u32 %v574, 4294901760
    %1485 = vmatpush1.msra.mxu0 %v1484
    %1486 = vmatprep.subr.mxu0 0.0
    %v1487 = vand.u32 %v575, 4294901760
    %1488 = vmatpush1.msra.mxu0 %v1487
    %1489 = vmatprep.subr.mxu0 0.0
    %v1490 = vand.u32 %v576, 4294901760
    %1491 = vmatpush1.msra.mxu0 %v1490
    %1492 = vmatprep.subr.mxu0 0.0
    %v1493 = vand.u32 %v577, 4294901760
    %1494 = vmatpush1.msra.mxu0 %v1493
    %1495 = vmatprep.subr.mxu0 0.0
    %v1496 = vand.u32 %v578, 4294901760
    %1497 = vmatpush1.msra.mxu0 %v1496
    %1498 = vmatprep.subr.mxu0 0.0
    %v1499 = vand.u32 %v579, 4294901760
    %1500 = vmatpush1.msra.mxu0 %v1499
    %1501 = vmatprep.subr.mxu0 0.0
    %v1502 = vand.u32 %v580, 4294901760
    %1503 = vmatpush1.msra.mxu0 %v1502
    %1504 = vmatprep.subr.mxu0 0.0
    %v1505 = vand.u32 %v581, 4294901760
    %1506 = vmatpush1.msra.mxu0 %v1505
    %1507 = vmatprep.subr.mxu0 0.0
    %v1508 = vand.u32 %v582, 4294901760
    %1509 = vmatpush1.msra.mxu0 %v1508
    %1510 = vmatprep.subr.mxu0 0.0
    %v1511 = vand.u32 %v583, 4294901760
    %1512 = vmatpush1.msra.mxu0 %v1511
    %1513 = vmatprep.subr.mxu0 0.0
    %v1514 = vand.u32 %v584, 4294901760
    %1515 = vmatpush1.msra.mxu0 %v1514
    %1516 = vmatprep.subr.mxu0 0.0
    %v1517 = vand.u32 %v585, 4294901760
    %1518 = vmatpush1.msra.mxu0 %v1517
    %1519 = vmatprep.subr.mxu0 0.0
    %v1520 = vand.u32 %v586, 4294901760
    %1521 = vmatpush1.msra.mxu0 %v1520
    %1522 = vmatprep.subr.mxu0 0.0
    %v1523 = vand.u32 %v587, 4294901760
    %1524 = vmatpush1.msra.mxu0 %v1523
    %1525 = vmatprep.subr.mxu0 0.0
    %v1526 = vand.u32 %v588, 4294901760
    %1527 = vmatpush1.msra.mxu0 %v1526
    %1528 = vmatprep.subr.mxu0 0.0
    %v1529 = vand.u32 %v589, 4294901760
    %1530 = vmatpush1.msra.mxu0 %v1529
    %1531 = vmatprep.subr.mxu0 0.0
    %v1532 = vand.u32 %v590, 4294901760
    %1533 = vmatpush1.msra.mxu0 %v1532
    %1534 = vmatprep.subr.mxu0 0.0
    %v1535 = vand.u32 %v591, 4294901760
    %1536 = vmatpush1.msra.mxu0 %v1535
    %v1537 = vand.u32 %v664, 4294901760
    %1538 = vmatprep.mubr.f32.mxu0 %v1537
    %v1539 = vand.u32 %v656, 4294901760
    %1540 = vmatmul.mubr.f32.gmra.mrb[0].mxu0 %v1539
    %v1541 = vpop.f32.mrb[0].mxu0
    %v1542 = vadd.f32 %v1438, %v1541
    %v1543 = vpop.f32.mrb[0].mxu0
    %1544 = vdwg.mxu0
    %1545 = vmatprep.subr.mxu0 0.0
    %v1546 = vand.u32 %v592, 4294901760
    %1547 = vmatpush1.msra.mxu0 %v1546
    %1548 = vmatprep.subr.mxu0 0.0
    %v1549 = vand.u32 %v593, 4294901760
    %1550 = vmatpush1.msra.mxu0 %v1549
    %1551 = vmatprep.subr.mxu0 0.0
    %v1552 = vand.u32 %v594, 4294901760
    %1553 = vmatpush1.msra.mxu0 %v1552
    %1554 = vmatprep.subr.mxu0 0.0
    %v1555 = vand.u32 %v595, 4294901760
    %1556 = vmatpush1.msra.mxu0 %v1555
    %1557 = vmatprep.subr.mxu0 0.0
    %v1558 = vand.u32 %v596, 4294901760
    %1559 = vmatpush1.msra.mxu0 %v1558
    %1560 = vmatprep.subr.mxu0 0.0
    %v1561 = vand.u32 %v597, 4294901760
    %1562 = vmatpush1.msra.mxu0 %v1561
    %1563 = vmatprep.subr.mxu0 0.0
    %v1564 = vand.u32 %v598, 4294901760
    %1565 = vmatpush1.msra.mxu0 %v1564
    %1566 = vmatprep.subr.mxu0 0.0
    %v1567 = vand.u32 %v599, 4294901760
    %1568 = vmatpush1.msra.mxu0 %v1567
    %1569 = vmatprep.subr.mxu0 0.0
    %v1570 = vand.u32 %v600, 4294901760
    %1571 = vmatpush1.msra.mxu0 %v1570
    %1572 = vmatprep.subr.mxu0 0.0
    %v1573 = vand.u32 %v601, 4294901760
    %1574 = vmatpush1.msra.mxu0 %v1573
    %1575 = vmatprep.subr.mxu0 0.0
    %v1576 = vand.u32 %v602, 4294901760
    %1577 = vmatpush1.msra.mxu0 %v1576
    %1578 = vmatprep.subr.mxu0 0.0
    %v1579 = vand.u32 %v603, 4294901760
    %1580 = vmatpush1.msra.mxu0 %v1579
    %1581 = vmatprep.subr.mxu0 0.0
    %v1582 = vand.u32 %v604, 4294901760
    %1583 = vmatpush1.msra.mxu0 %v1582
    %1584 = vmatprep.subr.mxu0 0.0
    %v1585 = vand.u32 %v605, 4294901760
    %1586 = vmatpush1.msra.mxu0 %v1585
    %1587 = vmatprep.subr.mxu0 0.0
    %v1588 = vand.u32 %v606, 4294901760
    %1589 = vmatpush1.msra.mxu0 %v1588
    %1590 = vmatprep.subr.mxu0 0.0
    %v1591 = vand.u32 %v607, 4294901760
    %1592 = vmatpush1.msra.mxu0 %v1591
    %1593 = vmatprep.subr.mxu0 0.0
    %v1594 = vand.u32 %v608, 4294901760
    %1595 = vmatpush1.msra.mxu0 %v1594
    %1596 = vmatprep.subr.mxu0 0.0
    %v1597 = vand.u32 %v609, 4294901760
    %1598 = vmatpush1.msra.mxu0 %v1597
    %1599 = vmatprep.subr.mxu0 0.0
    %v1600 = vand.u32 %v610, 4294901760
    %1601 = vmatpush1.msra.mxu0 %v1600
    %1602 = vmatprep.subr.mxu0 0.0
    %v1603 = vand.u32 %v611, 4294901760
    %1604 = vmatpush1.msra.mxu0 %v1603
    %1605 = vmatprep.subr.mxu0 0.0
    %v1606 = vand.u32 %v612, 4294901760
    %1607 = vmatpush1.msra.mxu0 %v1606
    %1608 = vmatprep.subr.mxu0 0.0
    %v1609 = vand.u32 %v613, 4294901760
    %1610 = vmatpush1.msra.mxu0 %v1609
    %1611 = vmatprep.subr.mxu0 0.0
    %v1612 = vand.u32 %v614, 4294901760
    %1613 = vmatpush1.msra.mxu0 %v1612
    %1614 = vmatprep.subr.mxu0 0.0
    %v1615 = vand.u32 %v615, 4294901760
    %1616 = vmatpush1.msra.mxu0 %v1615
    %1617 = vmatprep.subr.mxu0 0.0
    %v1618 = vand.u32 %v616, 4294901760
    %1619 = vmatpush1.msra.mxu0 %v1618
    %1620 = vmatprep.subr.mxu0 0.0
    %v1621 = vand.u32 %v617, 4294901760
    %1622 = vmatpush1.msra.mxu0 %v1621
    %1623 = vmatprep.subr.mxu0 0.0
    %v1624 = vand.u32 %v618, 4294901760
    %1625 = vmatpush1.msra.mxu0 %v1624
    %1626 = vmatprep.subr.mxu0 0.0
    %v1627 = vand.u32 %v619, 4294901760
    %1628 = vmatpush1.msra.mxu0 %v1627
    %1629 = vmatprep.subr.mxu0 0.0
    %v1630 = vand.u32 %v620, 4294901760
    %1631 = vmatpush1.msra.mxu0 %v1630
    %1632 = vmatprep.subr.mxu0 0.0
    %v1633 = vand.u32 %v621, 4294901760
    %1634 = vmatpush1.msra.mxu0 %v1633
    %1635 = vmatprep.subr.mxu0 0.0
    %v1636 = vand.u32 %v622, 4294901760
    %1637 = vmatpush1.msra.mxu0 %v1636
    %1638 = vmatprep.subr.mxu0 0.0
    %v1639 = vand.u32 %v623, 4294901760
    %1640 = vmatpush1.msra.mxu0 %v1639
    %v1641 = vand.u32 %v665, 4294901760
    %v1642 = vsub.f32 %v665, %v1641
    %v1643 = vand.u32 %v1642, 4294901760
    %v1644 = vsub.f32 %v1642, %v1643
    %v1645 = vand.u32 %v1644, 4294901760
    %1646 = vmatprep.mubr.f32.mxu0 %v1645
    %v1647 = vand.u32 %v663, 4294901760
    %v1648 = vsub.f32 %v663, %v1647
    %v1649 = vand.u32 %v1648, 4294901760
    %v1650 = vsub.f32 %v1648, %v1649
    %v1651 = vand.u32 %v1650, 4294901760
    %1652 = vmatmul.mubr.f32.gmra.mrb[0].mxu0 %v1651
    %v1653 = vpop.f32.mrb[0].mxu0
    %v1654 = vadd.f32 %v1542, %v1653
    %v1655 = vpop.f32.mrb[0].mxu0
    %1656 = vdwg.mxu0
    %1657 = vmatprep.subr.mxu0 0.0
    %v1658 = vand.u32 %v592, 4294901760
    %v1659 = vsub.f32 %v592, %v1658
    %v1660 = vand.u32 %v1659, 4294901760
    %v1661 = vsub.f32 %v1659, %v1660
    %v1662 = vand.u32 %v1661, 4294901760
    %1663 = vmatpush1.msra.mxu0 %v1662
    %1664 = vmatprep.subr.mxu0 0.0
    %v1665 = vand.u32 %v593, 4294901760
    %v1666 = vsub.f32 %v593, %v1665
    %v1667 = vand.u32 %v1666, 4294901760
    %v1668 = vsub.f32 %v1666, %v1667
    %v1669 = vand.u32 %v1668, 4294901760
    %1670 = vmatpush1.msra.mxu0 %v1669
    %1671 = vmatprep.subr.mxu0 0.0
    %v1672 = vand.u32 %v594, 4294901760
    %v1673 = vsub.f32 %v594, %v1672
    %v1674 = vand.u32 %v1673, 4294901760
    %v1675 = vsub.f32 %v1673, %v1674
    %v1676 = vand.u32 %v1675, 4294901760
    %1677 = vmatpush1.msra.mxu0 %v1676
    %1678 = vmatprep.subr.mxu0 0.0
    %v1679 = vand.u32 %v595, 4294901760
    %v1680 = vsub.f32 %v595, %v1679
    %v1681 = vand.u32 %v1680, 4294901760
    %v1682 = vsub.f32 %v1680, %v1681
    %v1683 = vand.u32 %v1682, 4294901760
    %1684 = vmatpush1.msra.mxu0 %v1683
    %1685 = vmatprep.subr.mxu0 0.0
    %v1686 = vand.u32 %v596, 4294901760
    %v1687 = vsub.f32 %v596, %v1686
    %v1688 = vand.u32 %v1687, 4294901760
    %v1689 = vsub.f32 %v1687, %v1688
    %v1690 = vand.u32 %v1689, 4294901760
    %1691 = vmatpush1.msra.mxu0 %v1690
    %1692 = vmatprep.subr.mxu0 0.0
    %v1693 = vand.u32 %v597, 4294901760
    %v1694 = vsub.f32 %v597, %v1693
    %v1695 = vand.u32 %v1694, 4294901760
    %v1696 = vsub.f32 %v1694, %v1695
    %v1697 = vand.u32 %v1696, 4294901760
    %1698 = vmatpush1.msra.mxu0 %v1697
    %1699 = vmatprep.subr.mxu0 0.0
    %v1700 = vand.u32 %v598, 4294901760
    %v1701 = vsub.f32 %v598, %v1700
    %v1702 = vand.u32 %v1701, 4294901760
    %v1703 = vsub.f32 %v1701, %v1702
    %v1704 = vand.u32 %v1703, 4294901760
    %1705 = vmatpush1.msra.mxu0 %v1704
    %1706 = vmatprep.subr.mxu0 0.0
    %v1707 = vand.u32 %v599, 4294901760
    %v1708 = vsub.f32 %v599, %v1707
    %v1709 = vand.u32 %v1708, 4294901760
    %v1710 = vsub.f32 %v1708, %v1709
    %v1711 = vand.u32 %v1710, 4294901760
    %1712 = vmatpush1.msra.mxu0 %v1711
    %1713 = vmatprep.subr.mxu0 0.0
    %v1714 = vand.u32 %v600, 4294901760
    %v1715 = vsub.f32 %v600, %v1714
    %v1716 = vand.u32 %v1715, 4294901760
    %v1717 = vsub.f32 %v1715, %v1716
    %v1718 = vand.u32 %v1717, 4294901760
    %1719 = vmatpush1.msra.mxu0 %v1718
    %1720 = vmatprep.subr.mxu0 0.0
    %v1721 = vand.u32 %v601, 4294901760
    %v1722 = vsub.f32 %v601, %v1721
    %v1723 = vand.u32 %v1722, 4294901760
    %v1724 = vsub.f32 %v1722, %v1723
    %v1725 = vand.u32 %v1724, 4294901760
    %1726 = vmatpush1.msra.mxu0 %v1725
    %1727 = vmatprep.subr.mxu0 0.0
    %v1728 = vand.u32 %v602, 4294901760
    %v1729 = vsub.f32 %v602, %v1728
    %v1730 = vand.u32 %v1729, 4294901760
    %v1731 = vsub.f32 %v1729, %v1730
    %v1732 = vand.u32 %v1731, 4294901760
    %1733 = vmatpush1.msra.mxu0 %v1732
    %1734 = vmatprep.subr.mxu0 0.0
    %v1735 = vand.u32 %v603, 4294901760
    %v1736 = vsub.f32 %v603, %v1735
    %v1737 = vand.u32 %v1736, 4294901760
    %v1738 = vsub.f32 %v1736, %v1737
    %v1739 = vand.u32 %v1738, 4294901760
    %1740 = vmatpush1.msra.mxu0 %v1739
    %1741 = vmatprep.subr.mxu0 0.0
    %v1742 = vand.u32 %v604, 4294901760
    %v1743 = vsub.f32 %v604, %v1742
    %v1744 = vand.u32 %v1743, 4294901760
    %v1745 = vsub.f32 %v1743, %v1744
    %v1746 = vand.u32 %v1745, 4294901760
    %1747 = vmatpush1.msra.mxu0 %v1746
    %1748 = vmatprep.subr.mxu0 0.0
    %v1749 = vand.u32 %v605, 4294901760
    %v1750 = vsub.f32 %v605, %v1749
    %v1751 = vand.u32 %v1750, 4294901760
    %v1752 = vsub.f32 %v1750, %v1751
    %v1753 = vand.u32 %v1752, 4294901760
    %1754 = vmatpush1.msra.mxu0 %v1753
    %1755 = vmatprep.subr.mxu0 0.0
    %v1756 = vand.u32 %v606, 4294901760
    %v1757 = vsub.f32 %v606, %v1756
    %v1758 = vand.u32 %v1757, 4294901760
    %v1759 = vsub.f32 %v1757, %v1758
    %v1760 = vand.u32 %v1759, 4294901760
    %1761 = vmatpush1.msra.mxu0 %v1760
    %1762 = vmatprep.subr.mxu0 0.0
    %v1763 = vand.u32 %v607, 4294901760
    %v1764 = vsub.f32 %v607, %v1763
    %v1765 = vand.u32 %v1764, 4294901760
    %v1766 = vsub.f32 %v1764, %v1765
    %v1767 = vand.u32 %v1766, 4294901760
    %1768 = vmatpush1.msra.mxu0 %v1767
    %1769 = vmatprep.subr.mxu0 0.0
    %v1770 = vand.u32 %v608, 4294901760
    %v1771 = vsub.f32 %v608, %v1770
    %v1772 = vand.u32 %v1771, 4294901760
    %v1773 = vsub.f32 %v1771, %v1772
    %v1774 = vand.u32 %v1773, 4294901760
    %1775 = vmatpush1.msra.mxu0 %v1774
    %1776 = vmatprep.subr.mxu0 0.0
    %v1777 = vand.u32 %v609, 4294901760
    %v1778 = vsub.f32 %v609, %v1777
    %v1779 = vand.u32 %v1778, 4294901760
    %v1780 = vsub.f32 %v1778, %v1779
    %v1781 = vand.u32 %v1780, 4294901760
    %1782 = vmatpush1.msra.mxu0 %v1781
    %1783 = vmatprep.subr.mxu0 0.0
    %v1784 = vand.u32 %v610, 4294901760
    %v1785 = vsub.f32 %v610, %v1784
    %v1786 = vand.u32 %v1785, 4294901760
    %v1787 = vsub.f32 %v1785, %v1786
    %v1788 = vand.u32 %v1787, 4294901760
    %1789 = vmatpush1.msra.mxu0 %v1788
    %1790 = vmatprep.subr.mxu0 0.0
    %v1791 = vand.u32 %v611, 4294901760
    %v1792 = vsub.f32 %v611, %v1791
    %v1793 = vand.u32 %v1792, 4294901760
    %v1794 = vsub.f32 %v1792, %v1793
    %v1795 = vand.u32 %v1794, 4294901760
    %1796 = vmatpush1.msra.mxu0 %v1795
    %1797 = vmatprep.subr.mxu0 0.0
    %v1798 = vand.u32 %v612, 4294901760
    %v1799 = vsub.f32 %v612, %v1798
    %v1800 = vand.u32 %v1799, 4294901760
    %v1801 = vsub.f32 %v1799, %v1800
    %v1802 = vand.u32 %v1801, 4294901760
    %1803 = vmatpush1.msra.mxu0 %v1802
    %1804 = vmatprep.subr.mxu0 0.0
    %v1805 = vand.u32 %v613, 4294901760
    %v1806 = vsub.f32 %v613, %v1805
    %v1807 = vand.u32 %v1806, 4294901760
    %v1808 = vsub.f32 %v1806, %v1807
    %v1809 = vand.u32 %v1808, 4294901760
    %1810 = vmatpush1.msra.mxu0 %v1809
    %1811 = vmatprep.subr.mxu0 0.0
    %v1812 = vand.u32 %v614, 4294901760
    %v1813 = vsub.f32 %v614, %v1812
    %v1814 = vand.u32 %v1813, 4294901760
    %v1815 = vsub.f32 %v1813, %v1814
    %v1816 = vand.u32 %v1815, 4294901760
    %1817 = vmatpush1.msra.mxu0 %v1816
    %1818 = vmatprep.subr.mxu0 0.0
    %v1819 = vand.u32 %v615, 4294901760
    %v1820 = vsub.f32 %v615, %v1819
    %v1821 = vand.u32 %v1820, 4294901760
    %v1822 = vsub.f32 %v1820, %v1821
    %v1823 = vand.u32 %v1822, 4294901760
    %1824 = vmatpush1.msra.mxu0 %v1823
    %1825 = vmatprep.subr.mxu0 0.0
    %v1826 = vand.u32 %v616, 4294901760
    %v1827 = vsub.f32 %v616, %v1826
    %v1828 = vand.u32 %v1827, 4294901760
    %v1829 = vsub.f32 %v1827, %v1828
    %v1830 = vand.u32 %v1829, 4294901760
    %1831 = vmatpush1.msra.mxu0 %v1830
    %1832 = vmatprep.subr.mxu0 0.0
    %v1833 = vand.u32 %v617, 4294901760
    %v1834 = vsub.f32 %v617, %v1833
    %v1835 = vand.u32 %v1834, 4294901760
    %v1836 = vsub.f32 %v1834, %v1835
    %v1837 = vand.u32 %v1836, 4294901760
    %1838 = vmatpush1.msra.mxu0 %v1837
    %1839 = vmatprep.subr.mxu0 0.0
    %v1840 = vand.u32 %v618, 4294901760
    %v1841 = vsub.f32 %v618, %v1840
    %v1842 = vand.u32 %v1841, 4294901760
    %v1843 = vsub.f32 %v1841, %v1842
    %v1844 = vand.u32 %v1843, 4294901760
    %1845 = vmatpush1.msra.mxu0 %v1844
    %1846 = vmatprep.subr.mxu0 0.0
    %v1847 = vand.u32 %v619, 4294901760
    %v1848 = vsub.f32 %v619, %v1847
    %v1849 = vand.u32 %v1848, 4294901760
    %v1850 = vsub.f32 %v1848, %v1849
    %v1851 = vand.u32 %v1850, 4294901760
    %1852 = vmatpush1.msra.mxu0 %v1851
    %1853 = vmatprep.subr.mxu0 0.0
    %v1854 = vand.u32 %v620, 4294901760
    %v1855 = vsub.f32 %v620, %v1854
    %v1856 = vand.u32 %v1855, 4294901760
    %v1857 = vsub.f32 %v1855, %v1856
    %v1858 = vand.u32 %v1857, 4294901760
    %1859 = vmatpush1.msra.mxu0 %v1858
    %1860 = vmatprep.subr.mxu0 0.0
    %v1861 = vand.u32 %v621, 4294901760
    %v1862 = vsub.f32 %v621, %v1861
    %v1863 = vand.u32 %v1862, 4294901760
    %v1864 = vsub.f32 %v1862, %v1863
    %v1865 = vand.u32 %v1864, 4294901760
    %1866 = vmatpush1.msra.mxu0 %v1865
    %1867 = vmatprep.subr.mxu0 0.0
    %v1868 = vand.u32 %v622, 4294901760
    %v1869 = vsub.f32 %v622, %v1868
    %v1870 = vand.u32 %v1869, 4294901760
    %v1871 = vsub.f32 %v1869, %v1870
    %v1872 = vand.u32 %v1871, 4294901760
    %1873 = vmatpush1.msra.mxu0 %v1872
    %1874 = vmatprep.subr.mxu0 0.0
    %v1875 = vand.u32 %v623, 4294901760
    %v1876 = vsub.f32 %v623, %v1875
    %v1877 = vand.u32 %v1876, 4294901760
    %v1878 = vsub.f32 %v1876, %v1877
    %v1879 = vand.u32 %v1878, 4294901760
    %1880 = vmatpush1.msra.mxu0 %v1879
    %v1881 = vand.u32 %v665, 4294901760
    %1882 = vmatprep.mubr.f32.mxu0 %v1881
    %v1883 = vand.u32 %v663, 4294901760
    %1884 = vmatmul.mubr.f32.gmra.mrb[0].mxu0 %v1883
    %v1885 = vpop.f32.mrb[0].mxu0
    %v1886 = vadd.f32 %v1654, %v1885
    %v1887 = vpop.f32.mrb[0].mxu0
    %1888 = vdwg.mxu0
    %1889 = vmatprep.subr.mxu0 0.0
    %v1890 = vand.u32 %v592, 4294901760
    %v1891 = vsub.f32 %v592, %v1890
    %1892 = vmatpush1.msra.mxu0 %v1891
    %1893 = vmatprep.subr.mxu0 0.0
    %v1894 = vand.u32 %v593, 4294901760
    %v1895 = vsub.f32 %v593, %v1894
    %1896 = vmatpush1.msra.mxu0 %v1895
    %1897 = vmatprep.subr.mxu0 0.0
    %v1898 = vand.u32 %v594, 4294901760
    %v1899 = vsub.f32 %v594, %v1898
    %1900 = vmatpush1.msra.mxu0 %v1899
    %1901 = vmatprep.subr.mxu0 0.0
    %v1902 = vand.u32 %v595, 4294901760
    %v1903 = vsub.f32 %v595, %v1902
    %1904 = vmatpush1.msra.mxu0 %v1903
    %1905 = vmatprep.subr.mxu0 0.0
    %v1906 = vand.u32 %v596, 4294901760
    %v1907 = vsub.f32 %v596, %v1906
    %1908 = vmatpush1.msra.mxu0 %v1907
    %1909 = vmatprep.subr.mxu0 0.0
    %v1910 = vand.u32 %v597, 4294901760
    %v1911 = vsub.f32 %v597, %v1910
    %1912 = vmatpush1.msra.mxu0 %v1911
    %1913 = vmatprep.subr.mxu0 0.0
    %v1914 = vand.u32 %v598, 4294901760
    %v1915 = vsub.f32 %v598, %v1914
    %1916 = vmatpush1.msra.mxu0 %v1915
    %1917 = vmatprep.subr.mxu0 0.0
    %v1918 = vand.u32 %v599, 4294901760
    %v1919 = vsub.f32 %v599, %v1918
    %1920 = vmatpush1.msra.mxu0 %v1919
    %1921 = vmatprep.subr.mxu0 0.0
    %v1922 = vand.u32 %v600, 4294901760
    %v1923 = vsub.f32 %v600, %v1922
    %1924 = vmatpush1.msra.mxu0 %v1923
    %1925 = vmatprep.subr.mxu0 0.0
    %v1926 = vand.u32 %v601, 4294901760
    %v1927 = vsub.f32 %v601, %v1926
    %1928 = vmatpush1.msra.mxu0 %v1927
    %1929 = vmatprep.subr.mxu0 0.0
    %v1930 = vand.u32 %v602, 4294901760
    %v1931 = vsub.f32 %v602, %v1930
    %1932 = vmatpush1.msra.mxu0 %v1931
    %1933 = vmatprep.subr.mxu0 0.0
    %v1934 = vand.u32 %v603, 4294901760
    %v1935 = vsub.f32 %v603, %v1934
    %1936 = vmatpush1.msra.mxu0 %v1935
    %1937 = vmatprep.subr.mxu0 0.0
    %v1938 = vand.u32 %v604, 4294901760
    %v1939 = vsub.f32 %v604, %v1938
    %1940 = vmatpush1.msra.mxu0 %v1939
    %1941 = vmatprep.subr.mxu0 0.0
    %v1942 = vand.u32 %v605, 4294901760
    %v1943 = vsub.f32 %v605, %v1942
    %1944 = vmatpush1.msra.mxu0 %v1943
    %1945 = vmatprep.subr.mxu0 0.0
    %v1946 = vand.u32 %v606, 4294901760
    %v1947 = vsub.f32 %v606, %v1946
    %1948 = vmatpush1.msra.mxu0 %v1947
    %1949 = vmatprep.subr.mxu0 0.0
    %v1950 = vand.u32 %v607, 4294901760
    %v1951 = vsub.f32 %v607, %v1950
    %1952 = vmatpush1.msra.mxu0 %v1951
    %1953 = vmatprep.subr.mxu0 0.0
    %v1954 = vand.u32 %v608, 4294901760
    %v1955 = vsub.f32 %v608, %v1954
    %1956 = vmatpush1.msra.mxu0 %v1955
    %1957 = vmatprep.subr.mxu0 0.0
    %v1958 = vand.u32 %v609, 4294901760
    %v1959 = vsub.f32 %v609, %v1958
    %1960 = vmatpush1.msra.mxu0 %v1959
    %1961 = vmatprep.subr.mxu0 0.0
    %v1962 = vand.u32 %v610, 4294901760
    %v1963 = vsub.f32 %v610, %v1962
    %1964 = vmatpush1.msra.mxu0 %v1963
    %1965 = vmatprep.subr.mxu0 0.0
    %v1966 = vand.u32 %v611, 4294901760
    %v1967 = vsub.f32 %v611, %v1966
    %1968 = vmatpush1.msra.mxu0 %v1967
    %1969 = vmatprep.subr.mxu0 0.0
    %v1970 = vand.u32 %v612, 4294901760
    %v1971 = vsub.f32 %v612, %v1970
    %1972 = vmatpush1.msra.mxu0 %v1971
    %1973 = vmatprep.subr.mxu0 0.0
    %v1974 = vand.u32 %v613, 4294901760
    %v1975 = vsub.f32 %v613, %v1974
    %1976 = vmatpush1.msra.mxu0 %v1975
    %1977 = vmatprep.subr.mxu0 0.0
    %v1978 = vand.u32 %v614, 4294901760
    %v1979 = vsub.f32 %v614, %v1978
    %1980 = vmatpush1.msra.mxu0 %v1979
    %1981 = vmatprep.subr.mxu0 0.0
    %v1982 = vand.u32 %v615, 4294901760
    %v1983 = vsub.f32 %v615, %v1982
    %1984 = vmatpush1.msra.mxu0 %v1983
    %1985 = vmatprep.subr.mxu0 0.0
    %v1986 = vand.u32 %v616, 4294901760
    %v1987 = vsub.f32 %v616, %v1986
    %1988 = vmatpush1.msra.mxu0 %v1987
    %1989 = vmatprep.subr.mxu0 0.0
    %v1990 = vand.u32 %v617, 4294901760
    %v1991 = vsub.f32 %v617, %v1990
    %1992 = vmatpush1.msra.mxu0 %v1991
    %1993 = vmatprep.subr.mxu0 0.0
    %v1994 = vand.u32 %v618, 4294901760
    %v1995 = vsub.f32 %v618, %v1994
    %1996 = vmatpush1.msra.mxu0 %v1995
    %1997 = vmatprep.subr.mxu0 0.0
    %v1998 = vand.u32 %v619, 4294901760
    %v1999 = vsub.f32 %v619, %v1998
    %2000 = vmatpush1.msra.mxu0 %v1999
    %2001 = vmatprep.subr.mxu0 0.0
    %v2002 = vand.u32 %v620, 4294901760
    %v2003 = vsub.f32 %v620, %v2002
    %2004 = vmatpush1.msra.mxu0 %v2003
    %2005 = vmatprep.subr.mxu0 0.0
    %v2006 = vand.u32 %v621, 4294901760
    %v2007 = vsub.f32 %v621, %v2006
    %2008 = vmatpush1.msra.mxu0 %v2007
    %2009 = vmatprep.subr.mxu0 0.0
    %v2010 = vand.u32 %v622, 4294901760
    %v2011 = vsub.f32 %v622, %v2010
    %2012 = vmatpush1.msra.mxu0 %v2011
    %2013 = vmatprep.subr.mxu0 0.0
    %v2014 = vand.u32 %v623, 4294901760
    %v2015 = vsub.f32 %v623, %v2014
    %2016 = vmatpush1.msra.mxu0 %v2015
    %v2017 = vand.u32 %v665, 4294901760
    %v2018 = vsub.f32 %v665, %v2017
    %2019 = vmatprep.mubr.f32.mxu0 %v2018
    %v2020 = vand.u32 %v663, 4294901760
    %v2021 = vsub.f32 %v663, %v2020
    %2022 = vmatmul.mubr.f32.gmra.mrb[0].mxu0 %v2021
    %v2023 = vpop.f32.mrb[0].mxu0
    %v2024 = vadd.f32 %v1886, %v2023
    %v2025 = vpop.f32.mrb[0].mxu0
    %2026 = vdwg.mxu0
    %2027 = vmatprep.subr.mxu0 0.0
    %v2028 = vand.u32 %v592, 4294901760
    %2029 = vmatpush1.msra.mxu0 %v2028
    %2030 = vmatprep.subr.mxu0 0.0
    %v2031 = vand.u32 %v593, 4294901760
    %2032 = vmatpush1.msra.mxu0 %v2031
    %2033 = vmatprep.subr.mxu0 0.0
    %v2034 = vand.u32 %v594, 4294901760
    %2035 = vmatpush1.msra.mxu0 %v2034
    %2036 = vmatprep.subr.mxu0 0.0
    %v2037 = vand.u32 %v595, 4294901760
    %2038 = vmatpush1.msra.mxu0 %v2037
    %2039 = vmatprep.subr.mxu0 0.0
    %v2040 = vand.u32 %v596, 4294901760
    %2041 = vmatpush1.msra.mxu0 %v2040
    %2042 = vmatprep.subr.mxu0 0.0
    %v2043 = vand.u32 %v597, 4294901760
    %2044 = vmatpush1.msra.mxu0 %v2043
    %2045 = vmatprep.subr.mxu0 0.0
    %v2046 = vand.u32 %v598, 4294901760
    %2047 = vmatpush1.msra.mxu0 %v2046
    %2048 = vmatprep.subr.mxu0 0.0
    %v2049 = vand.u32 %v599, 4294901760
    %2050 = vmatpush1.msra.mxu0 %v2049
    %2051 = vmatprep.subr.mxu0 0.0
    %v2052 = vand.u32 %v600, 4294901760
    %2053 = vmatpush1.msra.mxu0 %v2052
    %2054 = vmatprep.subr.mxu0 0.0
    %v2055 = vand.u32 %v601, 4294901760
    %2056 = vmatpush1.msra.mxu0 %v2055
    %2057 = vmatprep.subr.mxu0 0.0
    %v2058 = vand.u32 %v602, 4294901760
    %2059 = vmatpush1.msra.mxu0 %v2058
    %2060 = vmatprep.subr.mxu0 0.0
    %v2061 = vand.u32 %v603, 4294901760
    %2062 = vmatpush1.msra.mxu0 %v2061
    %2063 = vmatprep.subr.mxu0 0.0
    %v2064 = vand.u32 %v604, 4294901760
    %2065 = vmatpush1.msra.mxu0 %v2064
    %2066 = vmatprep.subr.mxu0 0.0
    %v2067 = vand.u32 %v605, 4294901760
    %2068 = vmatpush1.msra.mxu0 %v2067
    %2069 = vmatprep.subr.mxu0 0.0
    %v2070 = vand.u32 %v606, 4294901760
    %2071 = vmatpush1.msra.mxu0 %v2070
    %2072 = vmatprep.subr.mxu0 0.0
    %v2073 = vand.u32 %v607, 4294901760
    %2074 = vmatpush1.msra.mxu0 %v2073
    %2075 = vmatprep.subr.mxu0 0.0
    %v2076 = vand.u32 %v608, 4294901760
    %2077 = vmatpush1.msra.mxu0 %v2076
    %2078 = vmatprep.subr.mxu0 0.0
    %v2079 = vand.u32 %v609, 4294901760
    %2080 = vmatpush1.msra.mxu0 %v2079
    %2081 = vmatprep.subr.mxu0 0.0
    %v2082 = vand.u32 %v610, 4294901760
    %2083 = vmatpush1.msra.mxu0 %v2082
    %2084 = vmatprep.subr.mxu0 0.0
    %v2085 = vand.u32 %v611, 4294901760
    %2086 = vmatpush1.msra.mxu0 %v2085
    %2087 = vmatprep.subr.mxu0 0.0
    %v2088 = vand.u32 %v612, 4294901760
    %2089 = vmatpush1.msra.mxu0 %v2088
    %2090 = vmatprep.subr.mxu0 0.0
    %v2091 = vand.u32 %v613, 4294901760
    %2092 = vmatpush1.msra.mxu0 %v2091
    %2093 = vmatprep.subr.mxu0 0.0
    %v2094 = vand.u32 %v614, 4294901760
    %2095 = vmatpush1.msra.mxu0 %v2094
    %2096 = vmatprep.subr.mxu0 0.0
    %v2097 = vand.u32 %v615, 4294901760
    %2098 = vmatpush1.msra.mxu0 %v2097
    %2099 = vmatprep.subr.mxu0 0.0
    %v2100 = vand.u32 %v616, 4294901760
    %2101 = vmatpush1.msra.mxu0 %v2100
    %2102 = vmatprep.subr.mxu0 0.0
    %v2103 = vand.u32 %v617, 4294901760
    %2104 = vmatpush1.msra.mxu0 %v2103
    %2105 = vmatprep.subr.mxu0 0.0
    %v2106 = vand.u32 %v618, 4294901760
    %2107 = vmatpush1.msra.mxu0 %v2106
    %2108 = vmatprep.subr.mxu0 0.0
    %v2109 = vand.u32 %v619, 4294901760
    %2110 = vmatpush1.msra.mxu0 %v2109
    %2111 = vmatprep.subr.mxu0 0.0
    %v2112 = vand.u32 %v620, 4294901760
    %2113 = vmatpush1.msra.mxu0 %v2112
    %2114 = vmatprep.subr.mxu0 0.0
    %v2115 = vand.u32 %v621, 4294901760
    %2116 = vmatpush1.msra.mxu0 %v2115
    %2117 = vmatprep.subr.mxu0 0.0
    %v2118 = vand.u32 %v622, 4294901760
    %2119 = vmatpush1.msra.mxu0 %v2118
    %2120 = vmatprep.subr.mxu0 0.0
    %v2121 = vand.u32 %v623, 4294901760
    %2122 = vmatpush1.msra.mxu0 %v2121
    %v2123 = vand.u32 %v665, 4294901760
    %v2124 = vsub.f32 %v665, %v2123
    %v2125 = vand.u32 %v2124, 4294901760
    %2126 = vmatprep.mubr.f32.mxu0 %v2125
    %v2127 = vand.u32 %v663, 4294901760
    %v2128 = vsub.f32 %v663, %v2127
    %v2129 = vand.u32 %v2128, 4294901760
    %2130 = vmatmul.mubr.f32.gmra.mrb[0].mxu0 %v2129
    %v2131 = vpop.f32.mrb[0].mxu0
    %v2132 = vadd.f32 %v2024, %v2131
    %v2133 = vpop.f32.mrb[0].mxu0
    %2134 = vdwg.mxu0
    %2135 = vmatprep.subr.mxu0 0.0
    %v2136 = vand.u32 %v592, 4294901760
    %v2137 = vsub.f32 %v592, %v2136
    %v2138 = vand.u32 %v2137, 4294901760
    %2139 = vmatpush1.msra.mxu0 %v2138
    %2140 = vmatprep.subr.mxu0 0.0
    %v2141 = vand.u32 %v593, 4294901760
    %v2142 = vsub.f32 %v593, %v2141
    %v2143 = vand.u32 %v2142, 4294901760
    %2144 = vmatpush1.msra.mxu0 %v2143
    %2145 = vmatprep.subr.mxu0 0.0
    %v2146 = vand.u32 %v594, 4294901760
    %v2147 = vsub.f32 %v594, %v2146
    %v2148 = vand.u32 %v2147, 4294901760
    %2149 = vmatpush1.msra.mxu0 %v2148
    %2150 = vmatprep.subr.mxu0 0.0
    %v2151 = vand.u32 %v595, 4294901760
    %v2152 = vsub.f32 %v595, %v2151
    %v2153 = vand.u32 %v2152, 4294901760
    %2154 = vmatpush1.msra.mxu0 %v2153
    %2155 = vmatprep.subr.mxu0 0.0
    %v2156 = vand.u32 %v596, 4294901760
    %v2157 = vsub.f32 %v596, %v2156
    %v2158 = vand.u32 %v2157, 4294901760
    %2159 = vmatpush1.msra.mxu0 %v2158
    %2160 = vmatprep.subr.mxu0 0.0
    %v2161 = vand.u32 %v597, 4294901760
    %v2162 = vsub.f32 %v597, %v2161
    %v2163 = vand.u32 %v2162, 4294901760
    %2164 = vmatpush1.msra.mxu0 %v2163
    %2165 = vmatprep.subr.mxu0 0.0
    %v2166 = vand.u32 %v598, 4294901760
    %v2167 = vsub.f32 %v598, %v2166
    %v2168 = vand.u32 %v2167, 4294901760
    %2169 = vmatpush1.msra.mxu0 %v2168
    %2170 = vmatprep.subr.mxu0 0.0
    %v2171 = vand.u32 %v599, 4294901760
    %v2172 = vsub.f32 %v599, %v2171
    %v2173 = vand.u32 %v2172, 4294901760
    %2174 = vmatpush1.msra.mxu0 %v2173
    %2175 = vmatprep.subr.mxu0 0.0
    %v2176 = vand.u32 %v600, 4294901760
    %v2177 = vsub.f32 %v600, %v2176
    %v2178 = vand.u32 %v2177, 4294901760
    %2179 = vmatpush1.msra.mxu0 %v2178
    %2180 = vmatprep.subr.mxu0 0.0
    %v2181 = vand.u32 %v601, 4294901760
    %v2182 = vsub.f32 %v601, %v2181
    %v2183 = vand.u32 %v2182, 4294901760
    %2184 = vmatpush1.msra.mxu0 %v2183
    %2185 = vmatprep.subr.mxu0 0.0
    %v2186 = vand.u32 %v602, 4294901760
    %v2187 = vsub.f32 %v602, %v2186
    %v2188 = vand.u32 %v2187, 4294901760
    %2189 = vmatpush1.msra.mxu0 %v2188
    %2190 = vmatprep.subr.mxu0 0.0
    %v2191 = vand.u32 %v603, 4294901760
    %v2192 = vsub.f32 %v603, %v2191
    %v2193 = vand.u32 %v2192, 4294901760
    %2194 = vmatpush1.msra.mxu0 %v2193
    %2195 = vmatprep.subr.mxu0 0.0
    %v2196 = vand.u32 %v604, 4294901760
    %v2197 = vsub.f32 %v604, %v2196
    %v2198 = vand.u32 %v2197, 4294901760
    %2199 = vmatpush1.msra.mxu0 %v2198
    %2200 = vmatprep.subr.mxu0 0.0
    %v2201 = vand.u32 %v605, 4294901760
    %v2202 = vsub.f32 %v605, %v2201
    %v2203 = vand.u32 %v2202, 4294901760
    %2204 = vmatpush1.msra.mxu0 %v2203
    %2205 = vmatprep.subr.mxu0 0.0
    %v2206 = vand.u32 %v606, 4294901760
    %v2207 = vsub.f32 %v606, %v2206
    %v2208 = vand.u32 %v2207, 4294901760
    %2209 = vmatpush1.msra.mxu0 %v2208
    %2210 = vmatprep.subr.mxu0 0.0
    %v2211 = vand.u32 %v607, 4294901760
    %v2212 = vsub.f32 %v607, %v2211
    %v2213 = vand.u32 %v2212, 4294901760
    %2214 = vmatpush1.msra.mxu0 %v2213
    %2215 = vmatprep.subr.mxu0 0.0
    %v2216 = vand.u32 %v608, 4294901760
    %v2217 = vsub.f32 %v608, %v2216
    %v2218 = vand.u32 %v2217, 4294901760
    %2219 = vmatpush1.msra.mxu0 %v2218
    %2220 = vmatprep.subr.mxu0 0.0
    %v2221 = vand.u32 %v609, 4294901760
    %v2222 = vsub.f32 %v609, %v2221
    %v2223 = vand.u32 %v2222, 4294901760
    %2224 = vmatpush1.msra.mxu0 %v2223
    %2225 = vmatprep.subr.mxu0 0.0
    %v2226 = vand.u32 %v610, 4294901760
    %v2227 = vsub.f32 %v610, %v2226
    %v2228 = vand.u32 %v2227, 4294901760
    %2229 = vmatpush1.msra.mxu0 %v2228
    %2230 = vmatprep.subr.mxu0 0.0
    %v2231 = vand.u32 %v611, 4294901760
    %v2232 = vsub.f32 %v611, %v2231
    %v2233 = vand.u32 %v2232, 4294901760
    %2234 = vmatpush1.msra.mxu0 %v2233
    %2235 = vmatprep.subr.mxu0 0.0
    %v2236 = vand.u32 %v612, 4294901760
    %v2237 = vsub.f32 %v612, %v2236
    %v2238 = vand.u32 %v2237, 4294901760
    %2239 = vmatpush1.msra.mxu0 %v2238
    %2240 = vmatprep.subr.mxu0 0.0
    %v2241 = vand.u32 %v613, 4294901760
    %v2242 = vsub.f32 %v613, %v2241
    %v2243 = vand.u32 %v2242, 4294901760
    %2244 = vmatpush1.msra.mxu0 %v2243
    %2245 = vmatprep.subr.mxu0 0.0
    %v2246 = vand.u32 %v614, 4294901760
    %v2247 = vsub.f32 %v614, %v2246
    %v2248 = vand.u32 %v2247, 4294901760
    %2249 = vmatpush1.msra.mxu0 %v2248
    %2250 = vmatprep.subr.mxu0 0.0
    %v2251 = vand.u32 %v615, 4294901760
    %v2252 = vsub.f32 %v615, %v2251
    %v2253 = vand.u32 %v2252, 4294901760
    %2254 = vmatpush1.msra.mxu0 %v2253
    %2255 = vmatprep.subr.mxu0 0.0
    %v2256 = vand.u32 %v616, 4294901760
    %v2257 = vsub.f32 %v616, %v2256
    %v2258 = vand.u32 %v2257, 4294901760
    %2259 = vmatpush1.msra.mxu0 %v2258
    %2260 = vmatprep.subr.mxu0 0.0
    %v2261 = vand.u32 %v617, 4294901760
    %v2262 = vsub.f32 %v617, %v2261
    %v2263 = vand.u32 %v2262, 4294901760
    %2264 = vmatpush1.msra.mxu0 %v2263
    %2265 = vmatprep.subr.mxu0 0.0
    %v2266 = vand.u32 %v618, 4294901760
    %v2267 = vsub.f32 %v618, %v2266
    %v2268 = vand.u32 %v2267, 4294901760
    %2269 = vmatpush1.msra.mxu0 %v2268
    %2270 = vmatprep.subr.mxu0 0.0
    %v2271 = vand.u32 %v619, 4294901760
    %v2272 = vsub.f32 %v619, %v2271
    %v2273 = vand.u32 %v2272, 4294901760
    %2274 = vmatpush1.msra.mxu0 %v2273
    %2275 = vmatprep.subr.mxu0 0.0
    %v2276 = vand.u32 %v620, 4294901760
    %v2277 = vsub.f32 %v620, %v2276
    %v2278 = vand.u32 %v2277, 4294901760
    %2279 = vmatpush1.msra.mxu0 %v2278
    %2280 = vmatprep.subr.mxu0 0.0
    %v2281 = vand.u32 %v621, 4294901760
    %v2282 = vsub.f32 %v621, %v2281
    %v2283 = vand.u32 %v2282, 4294901760
    %2284 = vmatpush1.msra.mxu0 %v2283
    %2285 = vmatprep.subr.mxu0 0.0
    %v2286 = vand.u32 %v622, 4294901760
    %v2287 = vsub.f32 %v622, %v2286
    %v2288 = vand.u32 %v2287, 4294901760
    %2289 = vmatpush1.msra.mxu0 %v2288
    %2290 = vmatprep.subr.mxu0 0.0
    %v2291 = vand.u32 %v623, 4294901760
    %v2292 = vsub.f32 %v623, %v2291
    %v2293 = vand.u32 %v2292, 4294901760
    %2294 = vmatpush1.msra.mxu0 %v2293
    %v2295 = vand.u32 %v665, 4294901760
    %2296 = vmatprep.mubr.f32.mxu0 %v2295
    %v2297 = vand.u32 %v663, 4294901760
    %2298 = vmatmul.mubr.f32.gmra.mrb[0].mxu0 %v2297
    %v2299 = vpop.f32.mrb[0].mxu0
    %v2300 = vadd.f32 %v2132, %v2299
    %v2301 = vpop.f32.mrb[0].mxu0
    %2302 = vdwg.mxu0
    %2303 = vmatprep.subr.mxu0 0.0
    %v2304 = vand.u32 %v592, 4294901760
    %2305 = vmatpush1.msra.mxu0 %v2304
    %2306 = vmatprep.subr.mxu0 0.0
    %v2307 = vand.u32 %v593, 4294901760
    %2308 = vmatpush1.msra.mxu0 %v2307
    %2309 = vmatprep.subr.mxu0 0.0
    %v2310 = vand.u32 %v594, 4294901760
    %2311 = vmatpush1.msra.mxu0 %v2310
    %2312 = vmatprep.subr.mxu0 0.0
    %v2313 = vand.u32 %v595, 4294901760
    %2314 = vmatpush1.msra.mxu0 %v2313
    %2315 = vmatprep.subr.mxu0 0.0
    %v2316 = vand.u32 %v596, 4294901760
    %2317 = vmatpush1.msra.mxu0 %v2316
    %2318 = vmatprep.subr.mxu0 0.0
    %v2319 = vand.u32 %v597, 4294901760
    %2320 = vmatpush1.msra.mxu0 %v2319
    %2321 = vmatprep.subr.mxu0 0.0
    %v2322 = vand.u32 %v598, 4294901760
    %2323 = vmatpush1.msra.mxu0 %v2322
    %2324 = vmatprep.subr.mxu0 0.0
    %v2325 = vand.u32 %v599, 4294901760
    %2326 = vmatpush1.msra.mxu0 %v2325
    %2327 = vmatprep.subr.mxu0 0.0
    %v2328 = vand.u32 %v600, 4294901760
    %2329 = vmatpush1.msra.mxu0 %v2328
    %2330 = vmatprep.subr.mxu0 0.0
    %v2331 = vand.u32 %v601, 4294901760
    %2332 = vmatpush1.msra.mxu0 %v2331
    %2333 = vmatprep.subr.mxu0 0.0
    %v2334 = vand.u32 %v602, 4294901760
    %2335 = vmatpush1.msra.mxu0 %v2334
    %2336 = vmatprep.subr.mxu0 0.0
    %v2337 = vand.u32 %v603, 4294901760
    %2338 = vmatpush1.msra.mxu0 %v2337
    %2339 = vmatprep.subr.mxu0 0.0
    %v2340 = vand.u32 %v604, 4294901760
    %2341 = vmatpush1.msra.mxu0 %v2340
    %2342 = vmatprep.subr.mxu0 0.0
    %v2343 = vand.u32 %v605, 4294901760
    %2344 = vmatpush1.msra.mxu0 %v2343
    %2345 = vmatprep.subr.mxu0 0.0
    %v2346 = vand.u32 %v606, 4294901760
    %2347 = vmatpush1.msra.mxu0 %v2346
    %2348 = vmatprep.subr.mxu0 0.0
    %v2349 = vand.u32 %v607, 4294901760
    %2350 = vmatpush1.msra.mxu0 %v2349
    %2351 = vmatprep.subr.mxu0 0.0
    %v2352 = vand.u32 %v608, 4294901760
    %2353 = vmatpush1.msra.mxu0 %v2352
    %2354 = vmatprep.subr.mxu0 0.0
    %v2355 = vand.u32 %v609, 4294901760
    %2356 = vmatpush1.msra.mxu0 %v2355
    %2357 = vmatprep.subr.mxu0 0.0
    %v2358 = vand.u32 %v610, 4294901760
    %2359 = vmatpush1.msra.mxu0 %v2358
    %2360 = vmatprep.subr.mxu0 0.0
    %v2361 = vand.u32 %v611, 4294901760
    %2362 = vmatpush1.msra.mxu0 %v2361
    %2363 = vmatprep.subr.mxu0 0.0
    %v2364 = vand.u32 %v612, 4294901760
    %2365 = vmatpush1.msra.mxu0 %v2364
    %2366 = vmatprep.subr.mxu0 0.0
    %v2367 = vand.u32 %v613, 4294901760
    %2368 = vmatpush1.msra.mxu0 %v2367
    %2369 = vmatprep.subr.mxu0 0.0
    %v2370 = vand.u32 %v614, 4294901760
    %2371 = vmatpush1.msra.mxu0 %v2370
    %2372 = vmatprep.subr.mxu0 0.0
    %v2373 = vand.u32 %v615, 4294901760
    %2374 = vmatpush1.msra.mxu0 %v2373
    %2375 = vmatprep.subr.mxu0 0.0
    %v2376 = vand.u32 %v616, 4294901760
    %2377 = vmatpush1.msra.mxu0 %v2376
    %2378 = vmatprep.subr.mxu0 0.0
    %v2379 = vand.u32 %v617, 4294901760
    %2380 = vmatpush1.msra.mxu0 %v2379
    %2381 = vmatprep.subr.mxu0 0.0
    %v2382 = vand.u32 %v618, 4294901760
    %2383 = vmatpush1.msra.mxu0 %v2382
    %2384 = vmatprep.subr.mxu0 0.0
    %v2385 = vand.u32 %v619, 4294901760
    %2386 = vmatpush1.msra.mxu0 %v2385
    %2387 = vmatprep.subr.mxu0 0.0
    %v2388 = vand.u32 %v620, 4294901760
    %2389 = vmatpush1.msra.mxu0 %v2388
    %2390 = vmatprep.subr.mxu0 0.0
    %v2391 = vand.u32 %v621, 4294901760
    %2392 = vmatpush1.msra.mxu0 %v2391
    %2393 = vmatprep.subr.mxu0 0.0
    %v2394 = vand.u32 %v622, 4294901760
    %2395 = vmatpush1.msra.mxu0 %v2394
    %2396 = vmatprep.subr.mxu0 0.0
    %v2397 = vand.u32 %v623, 4294901760
    %2398 = vmatpush1.msra.mxu0 %v2397
    %v2399 = vand.u32 %v665, 4294901760
    %2400 = vmatprep.mubr.f32.mxu0 %v2399
    %v2401 = vand.u32 %v663, 4294901760
    %2402 = vmatmul.mubr.f32.gmra.mrb[0].mxu0 %v2401
    %v2403 = vpop.f32.mrb[0].mxu0
    %v2404 = vadd.f32 %v2300, %v2403
    %v2405 = vpop.f32.mrb[0].mxu0
    %2406 = vdwg.mxu0
    %2407 = vmatprep.subr.mxu0 0.0
    %v2408 = vand.u32 %v624, 4294901760
    %2409 = vmatpush1.msra.mxu0 %v2408
    %2410 = vmatprep.subr.mxu0 0.0
    %v2411 = vand.u32 %v625, 4294901760
    %2412 = vmatpush1.msra.mxu0 %v2411
    %2413 = vmatprep.subr.mxu0 0.0
    %v2414 = vand.u32 %v626, 4294901760
    %2415 = vmatpush1.msra.mxu0 %v2414
    %2416 = vmatprep.subr.mxu0 0.0
    %v2417 = vand.u32 %v627, 4294901760
    %2418 = vmatpush1.msra.mxu0 %v2417
    %2419 = vmatprep.subr.mxu0 0.0
    %v2420 = vand.u32 %v628, 4294901760
    %2421 = vmatpush1.msra.mxu0 %v2420
    %2422 = vmatprep.subr.mxu0 0.0
    %v2423 = vand.u32 %v629, 4294901760
    %2424 = vmatpush1.msra.mxu0 %v2423
    %2425 = vmatprep.subr.mxu0 0.0
    %v2426 = vand.u32 %v630, 4294901760
    %2427 = vmatpush1.msra.mxu0 %v2426
    %2428 = vmatprep.subr.mxu0 0.0
    %v2429 = vand.u32 %v631, 4294901760
    %2430 = vmatpush1.msra.mxu0 %v2429
    %2431 = vmatprep.subr.mxu0 0.0
    %v2432 = vand.u32 %v632, 4294901760
    %2433 = vmatpush1.msra.mxu0 %v2432
    %2434 = vmatprep.subr.mxu0 0.0
    %v2435 = vand.u32 %v633, 4294901760
    %2436 = vmatpush1.msra.mxu0 %v2435
    %2437 = vmatprep.subr.mxu0 0.0
    %v2438 = vand.u32 %v634, 4294901760
    %2439 = vmatpush1.msra.mxu0 %v2438
    %2440 = vmatprep.subr.mxu0 0.0
    %v2441 = vand.u32 %v635, 4294901760
    %2442 = vmatpush1.msra.mxu0 %v2441
    %2443 = vmatprep.subr.mxu0 0.0
    %v2444 = vand.u32 %v636, 4294901760
    %2445 = vmatpush1.msra.mxu0 %v2444
    %2446 = vmatprep.subr.mxu0 0.0
    %v2447 = vand.u32 %v637, 4294901760
    %2448 = vmatpush1.msra.mxu0 %v2447
    %2449 = vmatprep.subr.mxu0 0.0
    %v2450 = vand.u32 %v638, 4294901760
    %2451 = vmatpush1.msra.mxu0 %v2450
    %2452 = vmatprep.subr.mxu0 0.0
    %v2453 = vand.u32 %v681, 4294901760
    %2454 = vmatpush1.msra.mxu0 %v2453
    %2455 = vmatprep.subr.mxu0 0.0
    %2456 = vmatpush1.msra.mxu0 0.0
    %2457 = vmatprep.subr.mxu0 0.0
    %2458 = vmatpush1.msra.mxu0 0.0
    %2459 = vmatprep.subr.mxu0 0.0
    %2460 = vmatpush1.msra.mxu0 0.0
    %2461 = vmatprep.subr.mxu0 0.0
    %2462 = vmatpush1.msra.mxu0 0.0
    %2463 = vmatprep.subr.mxu0 0.0
    %2464 = vmatpush1.msra.mxu0 0.0
    %2465 = vmatprep.subr.mxu0 0.0
    %2466 = vmatpush1.msra.mxu0 0.0
    %2467 = vmatprep.subr.mxu0 0.0
    %2468 = vmatpush1.msra.mxu0 0.0
    %2469 = vmatprep.subr.mxu0 0.0
    %2470 = vmatpush1.msra.mxu0 0.0
    %2471 = vmatprep.subr.mxu0 0.0
    %2472 = vmatpush1.msra.mxu0 0.0
    %2473 = vmatprep.subr.mxu0 0.0
    %2474 = vmatpush1.msra.mxu0 0.0
    %2475 = vmatprep.subr.mxu0 0.0
    %2476 = vmatpush1.msra.mxu0 0.0
    %2477 = vmatprep.subr.mxu0 0.0
    %2478 = vmatpush1.msra.mxu0 0.0
    %2479 = vmatprep.subr.mxu0 0.0
    %2480 = vmatpush1.msra.mxu0 0.0
    %2481 = vmatprep.subr.mxu0 0.0
    %2482 = vmatpush1.msra.mxu0 0.0
    %2483 = vmatprep.subr.mxu0 0.0
    %2484 = vmatpush1.msra.mxu0 0.0
    %2485 = vmatprep.subr.mxu0 0.0
    %2486 = vmatpush1.msra.mxu0 0.0
    %2487 = vmatprep.mubr.f32.mxu0 0.0
    %v2488 = vand.u32 %v677, 4294901760
    %v2489 = vsub.f32 %v677, %v2488
    %v2490 = vand.u32 %v2489, 4294901760
    %v2491 = vsub.f32 %v2489, %v2490
    %v2492 = vand.u32 %v2491, 4294901760
    %2493 = vmatmul.mubr.f32.gmra.mrb[0].mxu0 %v2492
    %v2494 = vpop.f32.mrb[0].mxu0
    %v2495 = vadd.f32 %v2404, %v2494
    %v2496 = vpop.f32.mrb[0].mxu0
    %2497 = vdwg.mxu0
    %2498 = vmatprep.subr.mxu0 0.0
    %v2499 = vand.u32 %v624, 4294901760
    %v2500 = vsub.f32 %v624, %v2499
    %v2501 = vand.u32 %v2500, 4294901760
    %v2502 = vsub.f32 %v2500, %v2501
    %v2503 = vand.u32 %v2502, 4294901760
    %2504 = vmatpush1.msra.mxu0 %v2503
    %2505 = vmatprep.subr.mxu0 0.0
    %v2506 = vand.u32 %v625, 4294901760
    %v2507 = vsub.f32 %v625, %v2506
    %v2508 = vand.u32 %v2507, 4294901760
    %v2509 = vsub.f32 %v2507, %v2508
    %v2510 = vand.u32 %v2509, 4294901760
    %2511 = vmatpush1.msra.mxu0 %v2510
    %2512 = vmatprep.subr.mxu0 0.0
    %v2513 = vand.u32 %v626, 4294901760
    %v2514 = vsub.f32 %v626, %v2513
    %v2515 = vand.u32 %v2514, 4294901760
    %v2516 = vsub.f32 %v2514, %v2515
    %v2517 = vand.u32 %v2516, 4294901760
    %2518 = vmatpush1.msra.mxu0 %v2517
    %2519 = vmatprep.subr.mxu0 0.0
    %v2520 = vand.u32 %v627, 4294901760
    %v2521 = vsub.f32 %v627, %v2520
    %v2522 = vand.u32 %v2521, 4294901760
    %v2523 = vsub.f32 %v2521, %v2522
    %v2524 = vand.u32 %v2523, 4294901760
    %2525 = vmatpush1.msra.mxu0 %v2524
    %2526 = vmatprep.subr.mxu0 0.0
    %v2527 = vand.u32 %v628, 4294901760
    %v2528 = vsub.f32 %v628, %v2527
    %v2529 = vand.u32 %v2528, 4294901760
    %v2530 = vsub.f32 %v2528, %v2529
    %v2531 = vand.u32 %v2530, 4294901760
    %2532 = vmatpush1.msra.mxu0 %v2531
    %2533 = vmatprep.subr.mxu0 0.0
    %v2534 = vand.u32 %v629, 4294901760
    %v2535 = vsub.f32 %v629, %v2534
    %v2536 = vand.u32 %v2535, 4294901760
    %v2537 = vsub.f32 %v2535, %v2536
    %v2538 = vand.u32 %v2537, 4294901760
    %2539 = vmatpush1.msra.mxu0 %v2538
    %2540 = vmatprep.subr.mxu0 0.0
    %v2541 = vand.u32 %v630, 4294901760
    %v2542 = vsub.f32 %v630, %v2541
    %v2543 = vand.u32 %v2542, 4294901760
    %v2544 = vsub.f32 %v2542, %v2543
    %v2545 = vand.u32 %v2544, 4294901760
    %2546 = vmatpush1.msra.mxu0 %v2545
    %2547 = vmatprep.subr.mxu0 0.0
    %v2548 = vand.u32 %v631, 4294901760
    %v2549 = vsub.f32 %v631, %v2548
    %v2550 = vand.u32 %v2549, 4294901760
    %v2551 = vsub.f32 %v2549, %v2550
    %v2552 = vand.u32 %v2551, 4294901760
    %2553 = vmatpush1.msra.mxu0 %v2552
    %2554 = vmatprep.subr.mxu0 0.0
    %v2555 = vand.u32 %v632, 4294901760
    %v2556 = vsub.f32 %v632, %v2555
    %v2557 = vand.u32 %v2556, 4294901760
    %v2558 = vsub.f32 %v2556, %v2557
    %v2559 = vand.u32 %v2558, 4294901760
    %2560 = vmatpush1.msra.mxu0 %v2559
    %2561 = vmatprep.subr.mxu0 0.0
    %v2562 = vand.u32 %v633, 4294901760
    %v2563 = vsub.f32 %v633, %v2562
    %v2564 = vand.u32 %v2563, 4294901760
    %v2565 = vsub.f32 %v2563, %v2564
    %v2566 = vand.u32 %v2565, 4294901760
    %2567 = vmatpush1.msra.mxu0 %v2566
    %2568 = vmatprep.subr.mxu0 0.0
    %v2569 = vand.u32 %v634, 4294901760
    %v2570 = vsub.f32 %v634, %v2569
    %v2571 = vand.u32 %v2570, 4294901760
    %v2572 = vsub.f32 %v2570, %v2571
    %v2573 = vand.u32 %v2572, 4294901760
    %2574 = vmatpush1.msra.mxu0 %v2573
    %2575 = vmatprep.subr.mxu0 0.0
    %v2576 = vand.u32 %v635, 4294901760
    %v2577 = vsub.f32 %v635, %v2576
    %v2578 = vand.u32 %v2577, 4294901760
    %v2579 = vsub.f32 %v2577, %v2578
    %v2580 = vand.u32 %v2579, 4294901760
    %2581 = vmatpush1.msra.mxu0 %v2580
    %2582 = vmatprep.subr.mxu0 0.0
    %v2583 = vand.u32 %v636, 4294901760
    %v2584 = vsub.f32 %v636, %v2583
    %v2585 = vand.u32 %v2584, 4294901760
    %v2586 = vsub.f32 %v2584, %v2585
    %v2587 = vand.u32 %v2586, 4294901760
    %2588 = vmatpush1.msra.mxu0 %v2587
    %2589 = vmatprep.subr.mxu0 0.0
    %v2590 = vand.u32 %v637, 4294901760
    %v2591 = vsub.f32 %v637, %v2590
    %v2592 = vand.u32 %v2591, 4294901760
    %v2593 = vsub.f32 %v2591, %v2592
    %v2594 = vand.u32 %v2593, 4294901760
    %2595 = vmatpush1.msra.mxu0 %v2594
    %2596 = vmatprep.subr.mxu0 0.0
    %v2597 = vand.u32 %v638, 4294901760
    %v2598 = vsub.f32 %v638, %v2597
    %v2599 = vand.u32 %v2598, 4294901760
    %v2600 = vsub.f32 %v2598, %v2599
    %v2601 = vand.u32 %v2600, 4294901760
    %2602 = vmatpush1.msra.mxu0 %v2601
    %2603 = vmatprep.subr.mxu0 0.0
    %v2604 = vand.u32 %v681, 4294901760
    %v2605 = vsub.f32 %v681, %v2604
    %v2606 = vand.u32 %v2605, 4294901760
    %v2607 = vsub.f32 %v2605, %v2606
    %v2608 = vand.u32 %v2607, 4294901760
    %2609 = vmatpush1.msra.mxu0 %v2608
    %2610 = vmatprep.subr.mxu0 0.0
    %2611 = vmatpush1.msra.mxu0 0.0
    %2612 = vmatprep.subr.mxu0 0.0
    %2613 = vmatpush1.msra.mxu0 0.0
    %2614 = vmatprep.subr.mxu0 0.0
    %2615 = vmatpush1.msra.mxu0 0.0
    %2616 = vmatprep.subr.mxu0 0.0
    %2617 = vmatpush1.msra.mxu0 0.0
    %2618 = vmatprep.subr.mxu0 0.0
    %2619 = vmatpush1.msra.mxu0 0.0
    %2620 = vmatprep.subr.mxu0 0.0
    %2621 = vmatpush1.msra.mxu0 0.0
    %2622 = vmatprep.subr.mxu0 0.0
    %2623 = vmatpush1.msra.mxu0 0.0
    %2624 = vmatprep.subr.mxu0 0.0
    %2625 = vmatpush1.msra.mxu0 0.0
    %2626 = vmatprep.subr.mxu0 0.0
    %2627 = vmatpush1.msra.mxu0 0.0
    %2628 = vmatprep.subr.mxu0 0.0
    %2629 = vmatpush1.msra.mxu0 0.0
    %2630 = vmatprep.subr.mxu0 0.0
    %2631 = vmatpush1.msra.mxu0 0.0
    %2632 = vmatprep.subr.mxu0 0.0
    %2633 = vmatpush1.msra.mxu0 0.0
    %2634 = vmatprep.subr.mxu0 0.0
    %2635 = vmatpush1.msra.mxu0 0.0
    %2636 = vmatprep.subr.mxu0 0.0
    %2637 = vmatpush1.msra.mxu0 0.0
    %2638 = vmatprep.subr.mxu0 0.0
    %2639 = vmatpush1.msra.mxu0 0.0
    %2640 = vmatprep.subr.mxu0 0.0
    %2641 = vmatpush1.msra.mxu0 0.0
    %2642 = vmatprep.mubr.f32.mxu0 0.0
    %v2643 = vand.u32 %v677, 4294901760
    %2644 = vmatmul.mubr.f32.gmra.mrb[0].mxu0 %v2643
    %v2645 = vpop.f32.mrb[0].mxu0
    %v2646 = vadd.f32 %v2495, %v2645
    %v2647 = vpop.f32.mrb[0].mxu0
    %2648 = vdwg.mxu0
    %2649 = vmatprep.subr.mxu0 0.0
    %v2650 = vand.u32 %v624, 4294901760
    %v2651 = vsub.f32 %v624, %v2650
    %2652 = vmatpush1.msra.mxu0 %v2651
    %2653 = vmatprep.subr.mxu0 0.0
    %v2654 = vand.u32 %v625, 4294901760
    %v2655 = vsub.f32 %v625, %v2654
    %2656 = vmatpush1.msra.mxu0 %v2655
    %2657 = vmatprep.subr.mxu0 0.0
    %v2658 = vand.u32 %v626, 4294901760
    %v2659 = vsub.f32 %v626, %v2658
    %2660 = vmatpush1.msra.mxu0 %v2659
    %2661 = vmatprep.subr.mxu0 0.0
    %v2662 = vand.u32 %v627, 4294901760
    %v2663 = vsub.f32 %v627, %v2662
    %2664 = vmatpush1.msra.mxu0 %v2663
    %2665 = vmatprep.subr.mxu0 0.0
    %v2666 = vand.u32 %v628, 4294901760
    %v2667 = vsub.f32 %v628, %v2666
    %2668 = vmatpush1.msra.mxu0 %v2667
    %2669 = vmatprep.subr.mxu0 0.0
    %v2670 = vand.u32 %v629, 4294901760
    %v2671 = vsub.f32 %v629, %v2670
    %2672 = vmatpush1.msra.mxu0 %v2671
    %2673 = vmatprep.subr.mxu0 0.0
    %v2674 = vand.u32 %v630, 4294901760
    %v2675 = vsub.f32 %v630, %v2674
    %2676 = vmatpush1.msra.mxu0 %v2675
    %2677 = vmatprep.subr.mxu0 0.0
    %v2678 = vand.u32 %v631, 4294901760
    %v2679 = vsub.f32 %v631, %v2678
    %2680 = vmatpush1.msra.mxu0 %v2679
    %2681 = vmatprep.subr.mxu0 0.0
    %v2682 = vand.u32 %v632, 4294901760
    %v2683 = vsub.f32 %v632, %v2682
    %2684 = vmatpush1.msra.mxu0 %v2683
    %2685 = vmatprep.subr.mxu0 0.0
    %v2686 = vand.u32 %v633, 4294901760
    %v2687 = vsub.f32 %v633, %v2686
    %2688 = vmatpush1.msra.mxu0 %v2687
    %2689 = vmatprep.subr.mxu0 0.0
    %v2690 = vand.u32 %v634, 4294901760
    %v2691 = vsub.f32 %v634, %v2690
    %2692 = vmatpush1.msra.mxu0 %v2691
    %2693 = vmatprep.subr.mxu0 0.0
    %v2694 = vand.u32 %v635, 4294901760
    %v2695 = vsub.f32 %v635, %v2694
    %2696 = vmatpush1.msra.mxu0 %v2695
    %2697 = vmatprep.subr.mxu0 0.0
    %v2698 = vand.u32 %v636, 4294901760
    %v2699 = vsub.f32 %v636, %v2698
    %2700 = vmatpush1.msra.mxu0 %v2699
    %2701 = vmatprep.subr.mxu0 0.0
    %v2702 = vand.u32 %v637, 4294901760
    %v2703 = vsub.f32 %v637, %v2702
    %2704 = vmatpush1.msra.mxu0 %v2703
    %2705 = vmatprep.subr.mxu0 0.0
    %v2706 = vand.u32 %v638, 4294901760
    %v2707 = vsub.f32 %v638, %v2706
    %2708 = vmatpush1.msra.mxu0 %v2707
    %2709 = vmatprep.subr.mxu0 0.0
    %v2710 = vand.u32 %v681, 4294901760
    %v2711 = vsub.f32 %v681, %v2710
    %2712 = vmatpush1.msra.mxu0 %v2711
    %2713 = vmatprep.subr.mxu0 0.0
    %2714 = vmatpush1.msra.mxu0 0.0
    %2715 = vmatprep.subr.mxu0 0.0
    %2716 = vmatpush1.msra.mxu0 0.0
    %2717 = vmatprep.subr.mxu0 0.0
    %2718 = vmatpush1.msra.mxu0 0.0
    %2719 = vmatprep.subr.mxu0 0.0
    %2720 = vmatpush1.msra.mxu0 0.0
    %2721 = vmatprep.subr.mxu0 0.0
    %2722 = vmatpush1.msra.mxu0 0.0
    %2723 = vmatprep.subr.mxu0 0.0
    %2724 = vmatpush1.msra.mxu0 0.0
    %2725 = vmatprep.subr.mxu0 0.0
    %2726 = vmatpush1.msra.mxu0 0.0
    %2727 = vmatprep.subr.mxu0 0.0
    %2728 = vmatpush1.msra.mxu0 0.0
    %2729 = vmatprep.subr.mxu0 0.0
    %2730 = vmatpush1.msra.mxu0 0.0
    %2731 = vmatprep.subr.mxu0 0.0
    %2732 = vmatpush1.msra.mxu0 0.0
    %2733 = vmatprep.subr.mxu0 0.0
    %2734 = vmatpush1.msra.mxu0 0.0
    %2735 = vmatprep.subr.mxu0 0.0
    %2736 = vmatpush1.msra.mxu0 0.0
    %2737 = vmatprep.subr.mxu0 0.0
    %2738 = vmatpush1.msra.mxu0 0.0
    %2739 = vmatprep.subr.mxu0 0.0
    %2740 = vmatpush1.msra.mxu0 0.0
    %2741 = vmatprep.subr.mxu0 0.0
    %2742 = vmatpush1.msra.mxu0 0.0
    %2743 = vmatprep.subr.mxu0 0.0
    %2744 = vmatpush1.msra.mxu0 0.0
    %2745 = vmatprep.mubr.f32.mxu0 0.0
    %v2746 = vand.u32 %v677, 4294901760
    %v2747 = vsub.f32 %v677, %v2746
    %2748 = vmatmul.mubr.f32.gmra.mrb[0].mxu0 %v2747
    %v2749 = vpop.f32.mrb[0].mxu0
    %v2750 = vadd.f32 %v2646, %v2749
    %v2751 = vpop.f32.mrb[0].mxu0
    %2752 = vdwg.mxu0
    %2753 = vmatprep.subr.mxu0 0.0
    %v2754 = vand.u32 %v624, 4294901760
    %2755 = vmatpush1.msra.mxu0 %v2754
    %2756 = vmatprep.subr.mxu0 0.0
    %v2757 = vand.u32 %v625, 4294901760
    %2758 = vmatpush1.msra.mxu0 %v2757
    %2759 = vmatprep.subr.mxu0 0.0
    %v2760 = vand.u32 %v626, 4294901760
    %2761 = vmatpush1.msra.mxu0 %v2760
    %2762 = vmatprep.subr.mxu0 0.0
    %v2763 = vand.u32 %v627, 4294901760
    %2764 = vmatpush1.msra.mxu0 %v2763
    %2765 = vmatprep.subr.mxu0 0.0
    %v2766 = vand.u32 %v628, 4294901760
    %2767 = vmatpush1.msra.mxu0 %v2766
    %2768 = vmatprep.subr.mxu0 0.0
    %v2769 = vand.u32 %v629, 4294901760
    %2770 = vmatpush1.msra.mxu0 %v2769
    %2771 = vmatprep.subr.mxu0 0.0
    %v2772 = vand.u32 %v630, 4294901760
    %2773 = vmatpush1.msra.mxu0 %v2772
    %2774 = vmatprep.subr.mxu0 0.0
    %v2775 = vand.u32 %v631, 4294901760
    %2776 = vmatpush1.msra.mxu0 %v2775
    %2777 = vmatprep.subr.mxu0 0.0
    %v2778 = vand.u32 %v632, 4294901760
    %2779 = vmatpush1.msra.mxu0 %v2778
    %2780 = vmatprep.subr.mxu0 0.0
    %v2781 = vand.u32 %v633, 4294901760
    %2782 = vmatpush1.msra.mxu0 %v2781
    %2783 = vmatprep.subr.mxu0 0.0
    %v2784 = vand.u32 %v634, 4294901760
    %2785 = vmatpush1.msra.mxu0 %v2784
    %2786 = vmatprep.subr.mxu0 0.0
    %v2787 = vand.u32 %v635, 4294901760
    %2788 = vmatpush1.msra.mxu0 %v2787
    %2789 = vmatprep.subr.mxu0 0.0
    %v2790 = vand.u32 %v636, 4294901760
    %2791 = vmatpush1.msra.mxu0 %v2790
    %2792 = vmatprep.subr.mxu0 0.0
    %v2793 = vand.u32 %v637, 4294901760
    %2794 = vmatpush1.msra.mxu0 %v2793
    %2795 = vmatprep.subr.mxu0 0.0
    %v2796 = vand.u32 %v638, 4294901760
    %2797 = vmatpush1.msra.mxu0 %v2796
    %2798 = vmatprep.subr.mxu0 0.0
    %v2799 = vand.u32 %v681, 4294901760
    %2800 = vmatpush1.msra.mxu0 %v2799
    %2801 = vmatprep.subr.mxu0 0.0
    %2802 = vmatpush1.msra.mxu0 0.0
    %2803 = vmatprep.subr.mxu0 0.0
    %2804 = vmatpush1.msra.mxu0 0.0
    %2805 = vmatprep.subr.mxu0 0.0
    %2806 = vmatpush1.msra.mxu0 0.0
    %2807 = vmatprep.subr.mxu0 0.0
    %2808 = vmatpush1.msra.mxu0 0.0
    %2809 = vmatprep.subr.mxu0 0.0
    %2810 = vmatpush1.msra.mxu0 0.0
    %2811 = vmatprep.subr.mxu0 0.0
    %2812 = vmatpush1.msra.mxu0 0.0
    %2813 = vmatprep.subr.mxu0 0.0
    %2814 = vmatpush1.msra.mxu0 0.0
    %2815 = vmatprep.subr.mxu0 0.0
    %2816 = vmatpush1.msra.mxu0 0.0
    %2817 = vmatprep.subr.mxu0 0.0
    %2818 = vmatpush1.msra.mxu0 0.0
    %2819 = vmatprep.subr.mxu0 0.0
    %2820 = vmatpush1.msra.mxu0 0.0
    %2821 = vmatprep.subr.mxu0 0.0
    %2822 = vmatpush1.msra.mxu0 0.0
    %2823 = vmatprep.subr.mxu0 0.0
    %2824 = vmatpush1.msra.mxu0 0.0
    %2825 = vmatprep.subr.mxu0 0.0
    %2826 = vmatpush1.msra.mxu0 0.0
    %2827 = vmatprep.subr.mxu0 0.0
    %2828 = vmatpush1.msra.mxu0 0.0
    %2829 = vmatprep.subr.mxu0 0.0
    %2830 = vmatpush1.msra.mxu0 0.0
    %2831 = vmatprep.subr.mxu0 0.0
    %2832 = vmatpush1.msra.mxu0 0.0
    %2833 = vmatprep.mubr.f32.mxu0 0.0
    %v2834 = vand.u32 %v677, 4294901760
    %v2835 = vsub.f32 %v677, %v2834
    %v2836 = vand.u32 %v2835, 4294901760
    %2837 = vmatmul.mubr.f32.gmra.mrb[0].mxu0 %v2836
    %v2838 = vpop.f32.mrb[0].mxu0
    %v2839 = vadd.f32 %v2750, %v2838
    %v2840 = vpop.f32.mrb[0].mxu0
    %2841 = vdwg.mxu0
    %2842 = vmatprep.subr.mxu0 0.0
    %v2843 = vand.u32 %v624, 4294901760
    %v2844 = vsub.f32 %v624, %v2843
    %v2845 = vand.u32 %v2844, 4294901760
    %2846 = vmatpush1.msra.mxu0 %v2845
    %2847 = vmatprep.subr.mxu0 0.0
    %v2848 = vand.u32 %v625, 4294901760
    %v2849 = vsub.f32 %v625, %v2848
    %v2850 = vand.u32 %v2849, 4294901760
    %2851 = vmatpush1.msra.mxu0 %v2850
    %2852 = vmatprep.subr.mxu0 0.0
    %v2853 = vand.u32 %v626, 4294901760
    %v2854 = vsub.f32 %v626, %v2853
    %v2855 = vand.u32 %v2854, 4294901760
    %2856 = vmatpush1.msra.mxu0 %v2855
    %2857 = vmatprep.subr.mxu0 0.0
    %v2858 = vand.u32 %v627, 4294901760
    %v2859 = vsub.f32 %v627, %v2858
    %v2860 = vand.u32 %v2859, 4294901760
    %2861 = vmatpush1.msra.mxu0 %v2860
    %2862 = vmatprep.subr.mxu0 0.0
    %v2863 = vand.u32 %v628, 4294901760
    %v2864 = vsub.f32 %v628, %v2863
    %v2865 = vand.u32 %v2864, 4294901760
    %2866 = vmatpush1.msra.mxu0 %v2865
    %2867 = vmatprep.subr.mxu0 0.0
    %v2868 = vand.u32 %v629, 4294901760
    %v2869 = vsub.f32 %v629, %v2868
    %v2870 = vand.u32 %v2869, 4294901760
    %2871 = vmatpush1.msra.mxu0 %v2870
    %2872 = vmatprep.subr.mxu0 0.0
    %v2873 = vand.u32 %v630, 4294901760
    %v2874 = vsub.f32 %v630, %v2873
    %v2875 = vand.u32 %v2874, 4294901760
    %2876 = vmatpush1.msra.mxu0 %v2875
    %2877 = vmatprep.subr.mxu0 0.0
    %v2878 = vand.u32 %v631, 4294901760
    %v2879 = vsub.f32 %v631, %v2878
    %v2880 = vand.u32 %v2879, 4294901760
    %2881 = vmatpush1.msra.mxu0 %v2880
    %2882 = vmatprep.subr.mxu0 0.0
    %v2883 = vand.u32 %v632, 4294901760
    %v2884 = vsub.f32 %v632, %v2883
    %v2885 = vand.u32 %v2884, 4294901760
    %2886 = vmatpush1.msra.mxu0 %v2885
    %2887 = vmatprep.subr.mxu0 0.0
    %v2888 = vand.u32 %v633, 4294901760
    %v2889 = vsub.f32 %v633, %v2888
    %v2890 = vand.u32 %v2889, 4294901760
    %2891 = vmatpush1.msra.mxu0 %v2890
    %2892 = vmatprep.subr.mxu0 0.0
    %v2893 = vand.u32 %v634, 4294901760
    %v2894 = vsub.f32 %v634, %v2893
    %v2895 = vand.u32 %v2894, 4294901760
    %2896 = vmatpush1.msra.mxu0 %v2895
    %2897 = vmatprep.subr.mxu0 0.0
    %v2898 = vand.u32 %v635, 4294901760
    %v2899 = vsub.f32 %v635, %v2898
    %v2900 = vand.u32 %v2899, 4294901760
    %2901 = vmatpush1.msra.mxu0 %v2900
    %2902 = vmatprep.subr.mxu0 0.0
    %v2903 = vand.u32 %v636, 4294901760
    %v2904 = vsub.f32 %v636, %v2903
    %v2905 = vand.u32 %v2904, 4294901760
    %2906 = vmatpush1.msra.mxu0 %v2905
    %2907 = vmatprep.subr.mxu0 0.0
    %v2908 = vand.u32 %v637, 4294901760
    %v2909 = vsub.f32 %v637, %v2908
    %v2910 = vand.u32 %v2909, 4294901760
    %2911 = vmatpush1.msra.mxu0 %v2910
    %2912 = vmatprep.subr.mxu0 0.0
    %v2913 = vand.u32 %v638, 4294901760
    %v2914 = vsub.f32 %v638, %v2913
    %v2915 = vand.u32 %v2914, 4294901760
    %2916 = vmatpush1.msra.mxu0 %v2915
    %2917 = vmatprep.subr.mxu0 0.0
    %v2918 = vand.u32 %v681, 4294901760
    %v2919 = vsub.f32 %v681, %v2918
    %v2920 = vand.u32 %v2919, 4294901760
    %2921 = vmatpush1.msra.mxu0 %v2920
    %2922 = vmatprep.subr.mxu0 0.0
    %2923 = vmatpush1.msra.mxu0 0.0
    %2924 = vmatprep.subr.mxu0 0.0
    %2925 = vmatpush1.msra.mxu0 0.0
    %2926 = vmatprep.subr.mxu0 0.0
    %2927 = vmatpush1.msra.mxu0 0.0
    %2928 = vmatprep.subr.mxu0 0.0
    %2929 = vmatpush1.msra.mxu0 0.0
    %2930 = vmatprep.subr.mxu0 0.0
    %2931 = vmatpush1.msra.mxu0 0.0
    %2932 = vmatprep.subr.mxu0 0.0
    %2933 = vmatpush1.msra.mxu0 0.0
    %2934 = vmatprep.subr.mxu0 0.0
    %2935 = vmatpush1.msra.mxu0 0.0
    %2936 = vmatprep.subr.mxu0 0.0
    %2937 = vmatpush1.msra.mxu0 0.0
    %2938 = vmatprep.subr.mxu0 0.0
    %2939 = vmatpush1.msra.mxu0 0.0
    %2940 = vmatprep.subr.mxu0 0.0
    %2941 = vmatpush1.msra.mxu0 0.0
    %2942 = vmatprep.subr.mxu0 0.0
    %2943 = vmatpush1.msra.mxu0 0.0
    %2944 = vmatprep.subr.mxu0 0.0
    %2945 = vmatpush1.msra.mxu0 0.0
    %2946 = vmatprep.subr.mxu0 0.0
    %2947 = vmatpush1.msra.mxu0 0.0
    %2948 = vmatprep.subr.mxu0 0.0
    %2949 = vmatpush1.msra.mxu0 0.0
    %2950 = vmatprep.subr.mxu0 0.0
    %2951 = vmatpush1.msra.mxu0 0.0
    %2952 = vmatprep.subr.mxu0 0.0
    %2953 = vmatpush1.msra.mxu0 0.0
    %2954 = vmatprep.mubr.f32.mxu0 0.0
    %v2955 = vand.u32 %v677, 4294901760
    %2956 = vmatmul.mubr.f32.gmra.mrb[0].mxu0 %v2955
    %v2957 = vpop.f32.mrb[0].mxu0
    %v2958 = vadd.f32 %v2839, %v2957
    %v2959 = vpop.f32.mrb[0].mxu0
    %2960 = vdwg.mxu0
    %2961 = vmatprep.subr.mxu0 0.0
    %v2962 = vand.u32 %v624, 4294901760
    %2963 = vmatpush1.msra.mxu0 %v2962
    %2964 = vmatprep.subr.mxu0 0.0
    %v2965 = vand.u32 %v625, 4294901760
    %2966 = vmatpush1.msra.mxu0 %v2965
    %2967 = vmatprep.subr.mxu0 0.0
    %v2968 = vand.u32 %v626, 4294901760
    %2969 = vmatpush1.msra.mxu0 %v2968
    %2970 = vmatprep.subr.mxu0 0.0
    %v2971 = vand.u32 %v627, 4294901760
    %2972 = vmatpush1.msra.mxu0 %v2971
    %2973 = vmatprep.subr.mxu0 0.0
    %v2974 = vand.u32 %v628, 4294901760
    %2975 = vmatpush1.msra.mxu0 %v2974
    %2976 = vmatprep.subr.mxu0 0.0
    %v2977 = vand.u32 %v629, 4294901760
    %2978 = vmatpush1.msra.mxu0 %v2977
    %2979 = vmatprep.subr.mxu0 0.0
    %v2980 = vand.u32 %v630, 4294901760
    %2981 = vmatpush1.msra.mxu0 %v2980
    %2982 = vmatprep.subr.mxu0 0.0
    %v2983 = vand.u32 %v631, 4294901760
    %2984 = vmatpush1.msra.mxu0 %v2983
    %2985 = vmatprep.subr.mxu0 0.0
    %v2986 = vand.u32 %v632, 4294901760
    %2987 = vmatpush1.msra.mxu0 %v2986
    %2988 = vmatprep.subr.mxu0 0.0
    %v2989 = vand.u32 %v633, 4294901760
    %2990 = vmatpush1.msra.mxu0 %v2989
    %2991 = vmatprep.subr.mxu0 0.0
    %v2992 = vand.u32 %v634, 4294901760
    %2993 = vmatpush1.msra.mxu0 %v2992
    %2994 = vmatprep.subr.mxu0 0.0
    %v2995 = vand.u32 %v635, 4294901760
    %2996 = vmatpush1.msra.mxu0 %v2995
    %2997 = vmatprep.subr.mxu0 0.0
    %v2998 = vand.u32 %v636, 4294901760
    %2999 = vmatpush1.msra.mxu0 %v2998
    %3000 = vmatprep.subr.mxu0 0.0
    %v3001 = vand.u32 %v637, 4294901760
    %3002 = vmatpush1.msra.mxu0 %v3001
    %3003 = vmatprep.subr.mxu0 0.0
    %v3004 = vand.u32 %v638, 4294901760
    %3005 = vmatpush1.msra.mxu0 %v3004
    %3006 = vmatprep.subr.mxu0 0.0
    %v3007 = vand.u32 %v681, 4294901760
    %3008 = vmatpush1.msra.mxu0 %v3007
    %3009 = vmatprep.subr.mxu0 0.0
    %3010 = vmatpush1.msra.mxu0 0.0
    %3011 = vmatprep.subr.mxu0 0.0
    %3012 = vmatpush1.msra.mxu0 0.0
    %3013 = vmatprep.subr.mxu0 0.0
    %3014 = vmatpush1.msra.mxu0 0.0
    %3015 = vmatprep.subr.mxu0 0.0
    %3016 = vmatpush1.msra.mxu0 0.0
    %3017 = vmatprep.subr.mxu0 0.0
    %3018 = vmatpush1.msra.mxu0 0.0
    %3019 = vmatprep.subr.mxu0 0.0
    %3020 = vmatpush1.msra.mxu0 0.0
    %3021 = vmatprep.subr.mxu0 0.0
    %3022 = vmatpush1.msra.mxu0 0.0
    %3023 = vmatprep.subr.mxu0 0.0
    %3024 = vmatpush1.msra.mxu0 0.0
    %3025 = vmatprep.subr.mxu0 0.0
    %3026 = vmatpush1.msra.mxu0 0.0
    %3027 = vmatprep.subr.mxu0 0.0
    %3028 = vmatpush1.msra.mxu0 0.0
    %3029 = vmatprep.subr.mxu0 0.0
    %3030 = vmatpush1.msra.mxu0 0.0
    %3031 = vmatprep.subr.mxu0 0.0
    %3032 = vmatpush1.msra.mxu0 0.0
    %3033 = vmatprep.subr.mxu0 0.0
    %3034 = vmatpush1.msra.mxu0 0.0
    %3035 = vmatprep.subr.mxu0 0.0
    %3036 = vmatpush1.msra.mxu0 0.0
    %3037 = vmatprep.subr.mxu0 0.0
    %3038 = vmatpush1.msra.mxu0 0.0
    %3039 = vmatprep.subr.mxu0 0.0
    %3040 = vmatpush1.msra.mxu0 0.0
    %3041 = vmatprep.mubr.f32.mxu0 0.0
    %v3042 = vand.u32 %v677, 4294901760
    %3043 = vmatmul.mubr.f32.gmra.mrb[0].mxu0 %v3042
    %v3044 = vpop.f32.mrb[0].mxu0
    %v3045 = vadd.f32 %v2958, %v3044
    %v3046 = vpop.f32.mrb[0].mxu0
    %3047 = vdwg.mxu0
    %vm3048 = vcmask 74752
    %3049 = vst.msk [vmem:[#allocation6] sm:$0x3] %vm3048, %v3045
    // Predicated region
    $region26: #{small_model.1} parent=1 // pred_check
      _
    $region27: #{small_model.1} parent=1 // pred_check_branch
      %3051 = sbr.rel (0) target = $region29
    $region28: #{small_model.1} parent=1 // pred_region
      %s3053 = ssub.s32 32, 32
      %3054 = vsyncadd [#allocation4], %s3053
      %s3056 = sshll.u32 [#allocation6], 4
      %s3057 = int_to_ptr.vmem [resolvable:$true] %s3056
      %3059 = dma.vmem_to_hbm [thread:$0]  %s3057, 32, %s5, [#allocation4]
    $region29: #{small_model.1} parent=1 // pred_fallthru
      _
    // Predicated region
    $region30: #{small_model.1} parent=1 // pred_check
      _
    $region31: #{small_model.1} parent=1 // pred_check_branch
      %3061 = sbr.rel (0) target = $region33
    $region32: #{small_model.1} parent=1 // pred_region
      %3062 = dma.done [#allocation4], 32
    $region33: #{small_model.1} parent=1 // pred_fallthru
      _
    %3063 = vsyncpa [#allocation4], 1
    %3064 = vsyncpa [#allocation5], 1

</llo_original>
